<compile_context>
chip_gen: v5e
topology: v5e:2x2
jax: 0.10.0
libtpu: 0.0.40
codegen_flags: <defaults>
</compile_context>

<pallas_src>
import functools

import jax
import jax.numpy as jnp
from jax import lax
from jax.experimental import pallas as pl
from jax.experimental.pallas import tpu as pltpu

NUM_HEADS = 4


# ----------------------------- Fused kernel --------------------------------- #
def _fused_kernel(x_ref, wq_ref, wk_ref, wv_ref, bq_ref, bk_ref, bv_ref,
                  wo_ref, bo_ref, wsc_ref, bsc_ref, wfc_ref, bfc_ref,
                  out_ref, scores_ref, *, num_heads, k, bt, seq):
    xm = x_ref[...]                                    # (Bt*S, C), rows = (b, s)
    M, C = xm.shape
    D = C // num_heads
    scale = 1.0 / float(D) ** 0.5

    # ---- multi-head self-attention, accumulated through the output proj ----
    acc = jnp.zeros((M, C), jnp.float32)
    for h in range(num_heads):                         # H = 4, unrolled
        q = (jnp.dot(xm, wq_ref[h], preferred_element_type=jnp.float32)
             + bq_ref[h]) * scale                      # (M, D)
        kk = jnp.dot(xm, wk_ref[h], preferred_element_type=jnp.float32) + bk_ref[h]
        vv = jnp.dot(xm, wv_ref[h], preferred_element_type=jnp.float32) + bv_ref[h]
        # leading-dim split only (S % 8 == 0): layout-preserving
        q3 = q.reshape(bt, seq, D)
        k3 = kk.reshape(bt, seq, D)
        v3 = vv.reshape(bt, seq, D)
        logits = jnp.einsum("bqd,bkd->bqk", q3, k3,
                            preferred_element_type=jnp.float32)    # (Bt, S, S)
        logits = logits - jnp.max(logits, axis=-1, keepdims=True)
        p = jnp.exp(logits)
        p = p / jnp.sum(p, axis=-1, keepdims=True)
        ctx = jnp.einsum("bqk,bkd->bqd", p, v3,
                         preferred_element_type=jnp.float32)       # (Bt, S, D)
        acc = acc + jnp.dot(ctx.reshape(M, D), wo_ref[h],
                            preferred_element_type=jnp.float32)    # (M, C)
    attn = acc + bo_ref[...]                           # (M, C)

    # ---- scorer: sigmoid(attn @ w_sc^T + b_sc) as a lane-dense (Bt, S) tile --
    attn3 = attn.reshape(bt, seq, C)
    logit = jnp.sum(attn3 * wsc_ref[...], axis=-1) + bsc_ref[0, 0]  # (Bt, S)
    scores = jax.nn.sigmoid(logit)
    scores_ref[...] = scores

    # ---- hard top-k (noise-free PerturbedTopK), batched over the Bt rows ----
    iota = lax.broadcasted_iota(jnp.int32, scores.shape, 1)
    remaining = scores
    weight = jnp.zeros_like(scores)
    for _ in range(k):
        m = jnp.max(remaining, axis=-1, keepdims=True)
        first = jnp.min(jnp.where(remaining >= m, iota, seq),
                        axis=-1, keepdims=True)
        onehot = (iota == first).astype(jnp.float32)
        weight = weight + onehot
        remaining = jnp.where(onehot > 0, jnp.float32(-1e30), remaining)
    pooled = weight * (1.0 / float(k))                 # (Bt, S): sum over k, /k

    # ---- pooling as one MXU matmul: block-diagonal selector @ activations ----
    col = lax.broadcasted_iota(jnp.int32, (bt, M), 1)
    row = lax.broadcasted_iota(jnp.int32, (bt, M), 0)
    lower = row * seq
    sel = (col >= lower) & (col < lower + seq)
    P = jnp.where(sel, jnp.tile(pooled, (1, bt)), 0.0)  # (Bt, Bt*S)
    feats = jnp.dot(P, xm, preferred_element_type=jnp.float32)      # (Bt, C)

    # ---- final fc ----
    out_ref[...] = (jnp.dot(feats, wfc_ref[...],
                            preferred_element_type=jnp.float32)
                    + bfc_ref[...])                    # (Bt, Cout)


# ----------------------------- Host-side prep -------------------------------- #
def _prepare_weights(params, num_heads):
    """Pre-transpose and pre-slice weights per head (free, host-side)."""
    C = params["w_out"].shape[0]
    D = C // num_heads
    w_in, b_in = params["w_in"], params["b_in"][0]      # (3C, C), (3C,)
    w_q, w_k, w_v = w_in[:C], w_in[C:2 * C], w_in[2 * C:]

    def per_head_in(w):   # (C, C) [out, in] -> (H, C_in, D): xm @ [h] = head h
        return jnp.stack([w[h * D:(h + 1) * D, :].T for h in range(num_heads)], 0)

    def per_head_b(b):    # (C,) -> (H, 1, D)
        return b.reshape(num_heads, 1, D)

    w_out = params["w_out"]                              # (C, C)
    # rows h*D:(h+1)*D of W_out^T, i.e. the per-head slice of the output proj
    wo = jnp.stack([w_out[:, h * D:(h + 1) * D].T for h in range(num_heads)], 0)

    return dict(
        wq=per_head_in(w_q), wk=per_head_in(w_k), wv=per_head_in(w_v),
        bq=per_head_b(b_in[:C]), bk=per_head_b(b_in[C:2 * C]),
        bv=per_head_b(b_in[2 * C:]),
        wo=wo, bo=params["b_out"],                       # (H, D, C), (1, C)
        wsc=params["w_sc"], bsc=params["b_sc"],          # (1, C), (1, 1)
        wfc=params["w_fc"].T, bfc=params["b_fc"],        # (C, Cout), (1, Cout)
    )


def _pick_batch_block(B, S, max_rows=1024, target_rows=128):
    """Batch elements per grid step. Prefer blocks with >= target_rows rows
    (fills vreg sublanes / MXU) but keep >= 2 grid steps when B allows so
    v7x's two TensorCores both get work. Bt must divide B and be either == B
    or a multiple of 8 so the (Bt, *) output blocks satisfy the (8,128) rule."""
    cands = [d for d in range(1, B + 1)
             if B % d == 0 and d * S <= max_rows and (d == B or d % 8 == 0)]
    if not cands:
        return B
    for d in cands:
        if d * S >= target_rows and B // d >= 2:
            return d
    return cands[-1]


# ----------------------------- Wrapper --------------------------------------- #
def selective_pooling_forward(x, params, k, num_heads=NUM_HEADS):
    B, S, C = x.shape
    assert C % num_heads == 0
    Cout = params["w_fc"].shape[0]
    D = C // num_heads
    H = num_heads
    Bt = _pick_batch_block(B, S)

    w = _prepare_weights(params, num_heads)
    x2 = x.reshape(B * S, C)            # free row-major reshape outside the kernel

    const3 = lambda i: (0, 0, 0)
    const2 = lambda i: (0, 0)

    out, scores = pl.pallas_call(
        functools.partial(_fused_kernel, num_heads=num_heads, k=k, bt=Bt, seq=S),
        out_shape=(jax.ShapeDtypeStruct((B, Cout), jnp.float32),
                   jax.ShapeDtypeStruct((B, S), jnp.float32)),
        grid=(B // Bt,),
        in_specs=[
            pl.BlockSpec((Bt * S, C), lambda i: (i, 0)),        # x (flattened rows)
            pl.BlockSpec((H, C, D), const3),                    # wq
            pl.BlockSpec((H, C, D), const3),                    # wk
            pl.BlockSpec((H, C, D), const3),                    # wv
            pl.BlockSpec((H, 1, D), const3),                    # bq
            pl.BlockSpec((H, 1, D), const3),                    # bk
            pl.BlockSpec((H, 1, D), const3),                    # bv
            pl.BlockSpec((H, D, C), const3),                    # wo
            pl.BlockSpec((1, C), const2),                       # b_out
            pl.BlockSpec((1, C), const2),                       # w_sc row
            pl.BlockSpec(memory_space=pltpu.MemorySpace.SMEM),  # b_sc scalar
            pl.BlockSpec((C, Cout), const2),                    # w_fc^T
            pl.BlockSpec((1, Cout), const2),                    # b_fc
        ],
        out_specs=[
            pl.BlockSpec((Bt, Cout), lambda i: (i, 0)),
            pl.BlockSpec((Bt, S), lambda i: (i, 0)),
        ],
        compiler_params=pltpu.CompilerParams(dimension_semantics=("parallel",)),
    )(x2, w["wq"], w["wk"], w["wv"], w["bq"], w["bk"], w["bv"],
      w["wo"], w["bo"], w["wsc"], w["bsc"], w["wfc"], w["bfc"])
    return out, scores


# ----------------------------- Reference (plain JAX) ------------------------- #
def reference_forward(x, params, k):
    B, S, C = x.shape
    H, D = NUM_HEADS, C // NUM_HEADS
    qkv = jnp.einsum("bsc,dc->bsd", x, params["w_in"]) + params["b_in"][0]
    q, kk, v = jnp.split(qkv, 3, axis=-1)
    q = q.reshape(B, S, H, D).transpose(0, 2, 1, 3) / jnp.sqrt(jnp.float32(D))
    kk = kk.reshape(B, S, H, D).transpose(0, 2, 1, 3)
    v = v.reshape(B, S, H, D).transpose(0, 2, 1, 3)
    p = jax.nn.softmax(jnp.einsum("bhqd,bhkd->bhqk", q, kk), axis=-1)
    attn = jnp.einsum("bhqk,bhkd->bhqd", p, v).transpose(0, 2, 1, 3).reshape(B, S, C)
    attn = attn @ params["w_out"].T + params["b_out"][0]
    scores = jax.nn.sigmoid(attn @ params["w_sc"].T + params["b_sc"][0])[..., 0]
    _, idx = lax.top_k(scores, k)
    onehot = jax.nn.one_hot(idx, S, dtype=jnp.float32)           # (B, k, S)
    feats = (onehot[..., None] * x[:, None]).sum(2).mean(1)      # (B, C)
    out = feats @ params["w_fc"].T + params["b_fc"][0]
    return out, scores


# ----------------------------- Main ------------------------------------------ #
if __name__ == "__main__":
    B, S, C, COUT, K = 2, 16, 32, 16, 4   # in_channels=32 (4 heads), out_channels=16

    key = jax.random.PRNGKey(0)
    ks = jax.random.split(key, 9)
    params = {
        "w_in":  0.1 * jax.random.normal(ks[0], (3 * C, C), jnp.float32),
        "b_in":  0.1 * jax.random.normal(ks[1], (1, 3 * C), jnp.float32),
        "w_out": 0.1 * jax.random.normal(ks[2], (C, C), jnp.float32),
        "b_out": 0.1 * jax.random.normal(ks[3], (1, C), jnp.float32),
        "w_sc":  0.1 * jax.random.normal(ks[4], (1, C), jnp.float32),
        "b_sc":  0.1 * jax.random.normal(ks[5], (1, 1), jnp.float32),
        "w_fc":  0.1 * jax.random.normal(ks[6], (COUT, C), jnp.float32),
        "b_fc":  0.1 * jax.random.normal(ks[7], (1, COUT), jnp.float32),
    }
    x = jax.random.normal(ks[8], (B, S, C), jnp.float32)

    outputs, scores = selective_pooling_forward(x, params, K)
    jax.block_until_ready((outputs, scores))

    ref_out, ref_scores = reference_forward(x, params, K)
    assert jnp.allclose(scores, ref_scores, atol=1e-3, rtol=1e-3), "scores mismatch"
    assert jnp.allclose(outputs, ref_out, atol=1e-3, rtol=1e-3), "outputs mismatch"

    print("KERNEL_OK")
</pallas_src>

<mosaic_0001>
module attributes {stable_mosaic.version = 11 : i64} {
  func.func @_fused_kernel(%arg0: i32, %arg1: memref<32x32xf32, #tpu.memory_space<vmem>>, %arg2: memref<4x32x8xf32, #tpu.memory_space<vmem>>, %arg3: memref<4x32x8xf32, #tpu.memory_space<vmem>>, %arg4: memref<4x32x8xf32, #tpu.memory_space<vmem>>, %arg5: memref<4x1x8xf32, #tpu.memory_space<vmem>>, %arg6: memref<4x1x8xf32, #tpu.memory_space<vmem>>, %arg7: memref<4x1x8xf32, #tpu.memory_space<vmem>>, %arg8: memref<4x8x32xf32, #tpu.memory_space<vmem>>, %arg9: memref<1x32xf32, #tpu.memory_space<vmem>>, %arg10: memref<1x32xf32, #tpu.memory_space<vmem>>, %arg11: memref<1x1xf32, #tpu.memory_space<smem>>, %arg12: memref<32x16xf32, #tpu.memory_space<vmem>>, %arg13: memref<1x16xf32, #tpu.memory_space<vmem>>, %arg14: memref<2x16xf32, #tpu.memory_space<vmem>>, %arg15: memref<2x16xf32, #tpu.memory_space<vmem>>) attributes {dimension_semantics = [#tpu.dimension_semantics<parallel>], iteration_bounds = array<i64: 1>, scalar_prefetch = 0 : i64, scratch_operands = 0 : i64, tpu.core_type = #tpu.core_type<tc>, window_params = [{transform_indices = @transform_0, window_bounds = array<i64: 32, 32>}, {pipeline_mode = #tpu.pipeline_mode<synchronous>, transform_indices = @transform_1, window_bounds = array<i64: 4, 32, 8>}, {pipeline_mode = #tpu.pipeline_mode<synchronous>, transform_indices = @transform_2, window_bounds = array<i64: 4, 32, 8>}, {pipeline_mode = #tpu.pipeline_mode<synchronous>, transform_indices = @transform_3, window_bounds = array<i64: 4, 32, 8>}, {pipeline_mode = #tpu.pipeline_mode<synchronous>, transform_indices = @transform_4, window_bounds = array<i64: 4, 1, 8>}, {pipeline_mode = #tpu.pipeline_mode<synchronous>, transform_indices = @transform_5, window_bounds = array<i64: 4, 1, 8>}, {pipeline_mode = #tpu.pipeline_mode<synchronous>, transform_indices = @transform_6, window_bounds = array<i64: 4, 1, 8>}, {pipeline_mode = #tpu.pipeline_mode<synchronous>, transform_indices = @transform_7, window_bounds = array<i64: 4, 8, 32>}, {pipeline_mode = #tpu.pipeline_mode<synchronous>, transform_indices = @transform_8, window_bounds = array<i64: 1, 32>}, {pipeline_mode = #tpu.pipeline_mode<synchronous>, transform_indices = @transform_9, window_bounds = array<i64: 1, 32>}, {transform_indices = @transform_10, window_bounds = array<i64: 1, 1>}, {pipeline_mode = #tpu.pipeline_mode<synchronous>, transform_indices = @transform_11, window_bounds = array<i64: 32, 16>}, {pipeline_mode = #tpu.pipeline_mode<synchronous>, transform_indices = @transform_12, window_bounds = array<i64: 1, 16>}, {transform_indices = @transform_13, window_bounds = array<i64: 2, 16>}, {transform_indices = @transform_14, window_bounds = array<i64: 2, 16>}]} {
    %c0 = arith.constant 0 : index
    %c0_0 = arith.constant 0 : index
    %0 = vector.load %arg1[%c0, %c0_0] : memref<32x32xf32, #tpu.memory_space<vmem>>, vector<32x32xf32>
    %cst = arith.constant 0.000000e+00 : f32
    %1 = vector.broadcast %cst : f32 to vector<32x32xf32>
    %c0_1 = arith.constant 0 : index
    %c0_2 = arith.constant 0 : index
    %c0_3 = arith.constant 0 : index
    %2 = vector.load %arg2[%c0_1, %c0_2, %c0_3] : memref<4x32x8xf32, #tpu.memory_space<vmem>>, vector<1x32x8xf32>
    %3 = vector.shape_cast %2 : vector<1x32x8xf32> to vector<32x8xf32>
    %cst_4 = arith.constant dense<0.000000e+00> : vector<32x8xf32>
    %4 = tpu.matmul %0, %3, %cst_4 {dimension_numbers = #tpu.dot_dimension_numbers<[1], [0], [0], [1], [0, 0, 1, 1], [], []>} : vector<32x32xf32>, vector<32x8xf32>, vector<32x8xf32> -> vector<32x8xf32>
    %c0_5 = arith.constant 0 : index
    %c0_6 = arith.constant 0 : index
    %c0_7 = arith.constant 0 : index
    %5 = vector.load %arg5[%c0_5, %c0_6, %c0_7] : memref<4x1x8xf32, #tpu.memory_space<vmem>>, vector<1x1x8xf32>
    %6 = vector.shape_cast %5 : vector<1x1x8xf32> to vector<1x8xf32>
    %7 = vector.broadcast %6 : vector<1x8xf32> to vector<32x8xf32>
    %8 = arith.addf %4, %7 : vector<32x8xf32>
    %cst_8 = arith.constant 0.353553385 : f32
    %9 = vector.broadcast %cst_8 : f32 to vector<32x8xf32>
    %10 = arith.mulf %8, %9 : vector<32x8xf32>
    %c0_9 = arith.constant 0 : index
    %c0_10 = arith.constant 0 : index
    %c0_11 = arith.constant 0 : index
    %11 = vector.load %arg3[%c0_9, %c0_10, %c0_11] : memref<4x32x8xf32, #tpu.memory_space<vmem>>, vector<1x32x8xf32>
    %12 = vector.shape_cast %11 : vector<1x32x8xf32> to vector<32x8xf32>
    %cst_12 = arith.constant dense<0.000000e+00> : vector<32x8xf32>
    %13 = tpu.matmul %0, %12, %cst_12 {dimension_numbers = #tpu.dot_dimension_numbers<[1], [0], [0], [1], [0, 0, 1, 1], [], []>} : vector<32x32xf32>, vector<32x8xf32>, vector<32x8xf32> -> vector<32x8xf32>
    %c0_13 = arith.constant 0 : index
    %c0_14 = arith.constant 0 : index
    %c0_15 = arith.constant 0 : index
    %14 = vector.load %arg6[%c0_13, %c0_14, %c0_15] : memref<4x1x8xf32, #tpu.memory_space<vmem>>, vector<1x1x8xf32>
    %15 = vector.shape_cast %14 : vector<1x1x8xf32> to vector<1x8xf32>
    %16 = vector.broadcast %15 : vector<1x8xf32> to vector<32x8xf32>
    %17 = arith.addf %13, %16 : vector<32x8xf32>
    %c0_16 = arith.constant 0 : index
    %c0_17 = arith.constant 0 : index
    %c0_18 = arith.constant 0 : index
    %18 = vector.load %arg4[%c0_16, %c0_17, %c0_18] : memref<4x32x8xf32, #tpu.memory_space<vmem>>, vector<1x32x8xf32>
    %19 = vector.shape_cast %18 : vector<1x32x8xf32> to vector<32x8xf32>
    %cst_19 = arith.constant dense<0.000000e+00> : vector<32x8xf32>
    %20 = tpu.matmul %0, %19, %cst_19 {dimension_numbers = #tpu.dot_dimension_numbers<[1], [0], [0], [1], [0, 0, 1, 1], [], []>} : vector<32x32xf32>, vector<32x8xf32>, vector<32x8xf32> -> vector<32x8xf32>
    %c0_20 = arith.constant 0 : index
    %c0_21 = arith.constant 0 : index
    %c0_22 = arith.constant 0 : index
    %21 = vector.load %arg7[%c0_20, %c0_21, %c0_22] : memref<4x1x8xf32, #tpu.memory_space<vmem>>, vector<1x1x8xf32>
    %22 = vector.shape_cast %21 : vector<1x1x8xf32> to vector<1x8xf32>
    %23 = vector.broadcast %22 : vector<1x8xf32> to vector<32x8xf32>
    %24 = arith.addf %20, %23 : vector<32x8xf32>
    %25 = vector.shape_cast %10 : vector<32x8xf32> to vector<2x16x8xf32>
    %26 = vector.shape_cast %17 : vector<32x8xf32> to vector<2x16x8xf32>
    %27 = vector.shape_cast %24 : vector<32x8xf32> to vector<2x16x8xf32>
    "tpu.trace_start"() <{level = 10 : i32, message = "bqd,bkd->bqk"}> : () -> ()
    %cst_23 = arith.constant dense<0.000000e+00> : vector<2x16x16xf32>
    %28 = tpu.matmul %25, %26, %cst_23 {dimension_numbers = #tpu.dot_dimension_numbers<[2], [2], [1], [1], [0, 0, 0, 1, 1, 1], [0], [0]>} : vector<2x16x8xf32>, vector<2x16x8xf32>, vector<2x16x16xf32> -> vector<2x16x16xf32>
    "tpu.trace_stop"() : () -> ()
    %cst_24 = arith.constant dense<0xFF800000> : vector<2x16xf32>
    %29 = vector.multi_reduction <maximumf>, %28, %cst_24 [2] : vector<2x16x16xf32> to vector<2x16xf32>
    %30 = vector.shape_cast %29 : vector<2x16xf32> to vector<2x16x1xf32>
    %31 = vector.broadcast %30 : vector<2x16x1xf32> to vector<2x16x16xf32>
    %32 = arith.subf %28, %31 : vector<2x16x16xf32>
    %33 = math.exp %32 : vector<2x16x16xf32>
    %cst_25 = arith.constant dense<0.000000e+00> : vector<2x16xf32>
    %34 = vector.multi_reduction <add>, %33, %cst_25 [2] : vector<2x16x16xf32> to vector<2x16xf32>
    %35 = vector.shape_cast %34 : vector<2x16xf32> to vector<2x16x1xf32>
    %36 = vector.broadcast %35 : vector<2x16x1xf32> to vector<2x16x16xf32>
    %37 = arith.divf %33, %36 : vector<2x16x16xf32>
    "tpu.trace_start"() <{level = 10 : i32, message = "bqk,bkd->bqd"}> : () -> ()
    %cst_26 = arith.constant dense<0.000000e+00> : vector<2x16x8xf32>
    %38 = tpu.matmul %37, %27, %cst_26 {dimension_numbers = #tpu.dot_dimension_numbers<[2], [1], [1], [2], [0, 0, 0, 1, 1, 2], [0], [0]>} : vector<2x16x16xf32>, vector<2x16x8xf32>, vector<2x16x8xf32> -> vector<2x16x8xf32>
    "tpu.trace_stop"() : () -> ()
    %39 = vector.shape_cast %38 : vector<2x16x8xf32> to vector<32x8xf32>
    %c0_27 = arith.constant 0 : index
    %c0_28 = arith.constant 0 : index
    %c0_29 = arith.constant 0 : index
    %40 = vector.load %arg8[%c0_27, %c0_28, %c0_29] : memref<4x8x32xf32, #tpu.memory_space<vmem>>, vector<1x8x32xf32>
    %41 = vector.shape_cast %40 : vector<1x8x32xf32> to vector<8x32xf32>
    %cst_30 = arith.constant dense<0.000000e+00> : vector<32x32xf32>
    %42 = tpu.matmul %39, %41, %cst_30 {dimension_numbers = #tpu.dot_dimension_numbers<[1], [0], [0], [1], [0, 0, 1, 1], [], []>} : vector<32x8xf32>, vector<8x32xf32>, vector<32x32xf32> -> vector<32x32xf32>
    %43 = arith.addf %1, %42 : vector<32x32xf32>
    %c1 = arith.constant 1 : index
    %c0_31 = arith.constant 0 : index
    %c0_32 = arith.constant 0 : index
    %44 = vector.load %arg2[%c1, %c0_31, %c0_32] : memref<4x32x8xf32, #tpu.memory_space<vmem>>, vector<1x32x8xf32>
    %45 = vector.shape_cast %44 : vector<1x32x8xf32> to vector<32x8xf32>
    %cst_33 = arith.constant dense<0.000000e+00> : vector<32x8xf32>
    %46 = tpu.matmul %0, %45, %cst_33 {dimension_numbers = #tpu.dot_dimension_numbers<[1], [0], [0], [1], [0, 0, 1, 1], [], []>} : vector<32x32xf32>, vector<32x8xf32>, vector<32x8xf32> -> vector<32x8xf32>
    %c1_34 = arith.constant 1 : index
    %c0_35 = arith.constant 0 : index
    %c0_36 = arith.constant 0 : index
    %47 = vector.load %arg5[%c1_34, %c0_35, %c0_36] : memref<4x1x8xf32, #tpu.memory_space<vmem>>, vector<1x1x8xf32>
    %48 = vector.shape_cast %47 : vector<1x1x8xf32> to vector<1x8xf32>
    %49 = vector.broadcast %48 : vector<1x8xf32> to vector<32x8xf32>
    %50 = arith.addf %46, %49 : vector<32x8xf32>
    %cst_37 = arith.constant 0.353553385 : f32
    %51 = vector.broadcast %cst_37 : f32 to vector<32x8xf32>
    %52 = arith.mulf %50, %51 : vector<32x8xf32>
    %c1_38 = arith.constant 1 : index
    %c0_39 = arith.constant 0 : index
    %c0_40 = arith.constant 0 : index
    %53 = vector.load %arg3[%c1_38, %c0_39, %c0_40] : memref<4x32x8xf32, #tpu.memory_space<vmem>>, vector<1x32x8xf32>
    %54 = vector.shape_cast %53 : vector<1x32x8xf32> to vector<32x8xf32>
    %cst_41 = arith.constant dense<0.000000e+00> : vector<32x8xf32>
    %55 = tpu.matmul %0, %54, %cst_41 {dimension_numbers = #tpu.dot_dimension_numbers<[1], [0], [0], [1], [0, 0, 1, 1], [], []>} : vector<32x32xf32>, vector<32x8xf32>, vector<32x8xf32> -> vector<32x8xf32>
    %c1_42 = arith.constant 1 : index
    %c0_43 = arith.constant 0 : index
    %c0_44 = arith.constant 0 : index
    %56 = vector.load %arg6[%c1_42, %c0_43, %c0_44] : memref<4x1x8xf32, #tpu.memory_space<vmem>>, vector<1x1x8xf32>
    %57 = vector.shape_cast %56 : vector<1x1x8xf32> to vector<1x8xf32>
    %58 = vector.broadcast %57 : vector<1x8xf32> to vector<32x8xf32>
    %59 = arith.addf %55, %58 : vector<32x8xf32>
    %c1_45 = arith.constant 1 : index
    %c0_46 = arith.constant 0 : index
    %c0_47 = arith.constant 0 : index
    %60 = vector.load %arg4[%c1_45, %c0_46, %c0_47] : memref<4x32x8xf32, #tpu.memory_space<vmem>>, vector<1x32x8xf32>
    %61 = vector.shape_cast %60 : vector<1x32x8xf32> to vector<32x8xf32>
    %cst_48 = arith.constant dense<0.000000e+00> : vector<32x8xf32>
    %62 = tpu.matmul %0, %61, %cst_48 {dimension_numbers = #tpu.dot_dimension_numbers<[1], [0], [0], [1], [0, 0, 1, 1], [], []>} : vector<32x32xf32>, vector<32x8xf32>, vector<32x8xf32> -> vector<32x8xf32>
    %c1_49 = arith.constant 1 : index
    %c0_50 = arith.constant 0 : index
    %c0_51 = arith.constant 0 : index
    %63 = vector.load %arg7[%c1_49, %c0_50, %c0_51] : memref<4x1x8xf32, #tpu.memory_space<vmem>>, vector<1x1x8xf32>
    %64 = vector.shape_cast %63 : vector<1x1x8xf32> to vector<1x8xf32>
    %65 = vector.broadcast %64 : vector<1x8xf32> to vector<32x8xf32>
    %66 = arith.addf %62, %65 : vector<32x8xf32>
    %67 = vector.shape_cast %52 : vector<32x8xf32> to vector<2x16x8xf32>
    %68 = vector.shape_cast %59 : vector<32x8xf32> to vector<2x16x8xf32>
    %69 = vector.shape_cast %66 : vector<32x8xf32> to vector<2x16x8xf32>
    "tpu.trace_start"() <{level = 10 : i32, message = "bqd,bkd->bqk"}> : () -> ()
    %cst_52 = arith.constant dense<0.000000e+00> : vector<2x16x16xf32>
    %70 = tpu.matmul %67, %68, %cst_52 {dimension_numbers = #tpu.dot_dimension_numbers<[2], [2], [1], [1], [0, 0, 0, 1, 1, 1], [0], [0]>} : vector<2x16x8xf32>, vector<2x16x8xf32>, vector<2x16x16xf32> -> vector<2x16x16xf32>
    "tpu.trace_stop"() : () -> ()
    %cst_53 = arith.constant dense<0xFF800000> : vector<2x16xf32>
    %71 = vector.multi_reduction <maximumf>, %70, %cst_53 [2] : vector<2x16x16xf32> to vector<2x16xf32>
    %72 = vector.shape_cast %71 : vector<2x16xf32> to vector<2x16x1xf32>
    %73 = vector.broadcast %72 : vector<2x16x1xf32> to vector<2x16x16xf32>
    %74 = arith.subf %70, %73 : vector<2x16x16xf32>
    %75 = math.exp %74 : vector<2x16x16xf32>
    %cst_54 = arith.constant dense<0.000000e+00> : vector<2x16xf32>
    %76 = vector.multi_reduction <add>, %75, %cst_54 [2] : vector<2x16x16xf32> to vector<2x16xf32>
    %77 = vector.shape_cast %76 : vector<2x16xf32> to vector<2x16x1xf32>
    %78 = vector.broadcast %77 : vector<2x16x1xf32> to vector<2x16x16xf32>
    %79 = arith.divf %75, %78 : vector<2x16x16xf32>
    "tpu.trace_start"() <{level = 10 : i32, message = "bqk,bkd->bqd"}> : () -> ()
    %cst_55 = arith.constant dense<0.000000e+00> : vector<2x16x8xf32>
    %80 = tpu.matmul %79, %69, %cst_55 {dimension_numbers = #tpu.dot_dimension_numbers<[2], [1], [1], [2], [0, 0, 0, 1, 1, 2], [0], [0]>} : vector<2x16x16xf32>, vector<2x16x8xf32>, vector<2x16x8xf32> -> vector<2x16x8xf32>
    "tpu.trace_stop"() : () -> ()
    %81 = vector.shape_cast %80 : vector<2x16x8xf32> to vector<32x8xf32>
    %c1_56 = arith.constant 1 : index
    %c0_57 = arith.constant 0 : index
    %c0_58 = arith.constant 0 : index
    %82 = vector.load %arg8[%c1_56, %c0_57, %c0_58] : memref<4x8x32xf32, #tpu.memory_space<vmem>>, vector<1x8x32xf32>
    %83 = vector.shape_cast %82 : vector<1x8x32xf32> to vector<8x32xf32>
    %cst_59 = arith.constant dense<0.000000e+00> : vector<32x32xf32>
    %84 = tpu.matmul %81, %83, %cst_59 {dimension_numbers = #tpu.dot_dimension_numbers<[1], [0], [0], [1], [0, 0, 1, 1], [], []>} : vector<32x8xf32>, vector<8x32xf32>, vector<32x32xf32> -> vector<32x32xf32>
    %85 = arith.addf %43, %84 : vector<32x32xf32>
    %c2 = arith.constant 2 : index
    %c0_60 = arith.constant 0 : index
    %c0_61 = arith.constant 0 : index
    %86 = vector.load %arg2[%c2, %c0_60, %c0_61] : memref<4x32x8xf32, #tpu.memory_space<vmem>>, vector<1x32x8xf32>
    %87 = vector.shape_cast %86 : vector<1x32x8xf32> to vector<32x8xf32>
    %cst_62 = arith.constant dense<0.000000e+00> : vector<32x8xf32>
    %88 = tpu.matmul %0, %87, %cst_62 {dimension_numbers = #tpu.dot_dimension_numbers<[1], [0], [0], [1], [0, 0, 1, 1], [], []>} : vector<32x32xf32>, vector<32x8xf32>, vector<32x8xf32> -> vector<32x8xf32>
    %c2_63 = arith.constant 2 : index
    %c0_64 = arith.constant 0 : index
    %c0_65 = arith.constant 0 : index
    %89 = vector.load %arg5[%c2_63, %c0_64, %c0_65] : memref<4x1x8xf32, #tpu.memory_space<vmem>>, vector<1x1x8xf32>
    %90 = vector.shape_cast %89 : vector<1x1x8xf32> to vector<1x8xf32>
    %91 = vector.broadcast %90 : vector<1x8xf32> to vector<32x8xf32>
    %92 = arith.addf %88, %91 : vector<32x8xf32>
    %cst_66 = arith.constant 0.353553385 : f32
    %93 = vector.broadcast %cst_66 : f32 to vector<32x8xf32>
    %94 = arith.mulf %92, %93 : vector<32x8xf32>
    %c2_67 = arith.constant 2 : index
    %c0_68 = arith.constant 0 : index
    %c0_69 = arith.constant 0 : index
    %95 = vector.load %arg3[%c2_67, %c0_68, %c0_69] : memref<4x32x8xf32, #tpu.memory_space<vmem>>, vector<1x32x8xf32>
    %96 = vector.shape_cast %95 : vector<1x32x8xf32> to vector<32x8xf32>
    %cst_70 = arith.constant dense<0.000000e+00> : vector<32x8xf32>
    %97 = tpu.matmul %0, %96, %cst_70 {dimension_numbers = #tpu.dot_dimension_numbers<[1], [0], [0], [1], [0, 0, 1, 1], [], []>} : vector<32x32xf32>, vector<32x8xf32>, vector<32x8xf32> -> vector<32x8xf32>
    %c2_71 = arith.constant 2 : index
    %c0_72 = arith.constant 0 : index
    %c0_73 = arith.constant 0 : index
    %98 = vector.load %arg6[%c2_71, %c0_72, %c0_73] : memref<4x1x8xf32, #tpu.memory_space<vmem>>, vector<1x1x8xf32>
    %99 = vector.shape_cast %98 : vector<1x1x8xf32> to vector<1x8xf32>
    %100 = vector.broadcast %99 : vector<1x8xf32> to vector<32x8xf32>
    %101 = arith.addf %97, %100 : vector<32x8xf32>
    %c2_74 = arith.constant 2 : index
    %c0_75 = arith.constant 0 : index
    %c0_76 = arith.constant 0 : index
    %102 = vector.load %arg4[%c2_74, %c0_75, %c0_76] : memref<4x32x8xf32, #tpu.memory_space<vmem>>, vector<1x32x8xf32>
    %103 = vector.shape_cast %102 : vector<1x32x8xf32> to vector<32x8xf32>
    %cst_77 = arith.constant dense<0.000000e+00> : vector<32x8xf32>
    %104 = tpu.matmul %0, %103, %cst_77 {dimension_numbers = #tpu.dot_dimension_numbers<[1], [0], [0], [1], [0, 0, 1, 1], [], []>} : vector<32x32xf32>, vector<32x8xf32>, vector<32x8xf32> -> vector<32x8xf32>
    %c2_78 = arith.constant 2 : index
    %c0_79 = arith.constant 0 : index
    %c0_80 = arith.constant 0 : index
    %105 = vector.load %arg7[%c2_78, %c0_79, %c0_80] : memref<4x1x8xf32, #tpu.memory_space<vmem>>, vector<1x1x8xf32>
    %106 = vector.shape_cast %105 : vector<1x1x8xf32> to vector<1x8xf32>
    %107 = vector.broadcast %106 : vector<1x8xf32> to vector<32x8xf32>
    %108 = arith.addf %104, %107 : vector<32x8xf32>
    %109 = vector.shape_cast %94 : vector<32x8xf32> to vector<2x16x8xf32>
    %110 = vector.shape_cast %101 : vector<32x8xf32> to vector<2x16x8xf32>
    %111 = vector.shape_cast %108 : vector<32x8xf32> to vector<2x16x8xf32>
    "tpu.trace_start"() <{level = 10 : i32, message = "bqd,bkd->bqk"}> : () -> ()
    %cst_81 = arith.constant dense<0.000000e+00> : vector<2x16x16xf32>
    %112 = tpu.matmul %109, %110, %cst_81 {dimension_numbers = #tpu.dot_dimension_numbers<[2], [2], [1], [1], [0, 0, 0, 1, 1, 1], [0], [0]>} : vector<2x16x8xf32>, vector<2x16x8xf32>, vector<2x16x16xf32> -> vector<2x16x16xf32>
    "tpu.trace_stop"() : () -> ()
    %cst_82 = arith.constant dense<0xFF800000> : vector<2x16xf32>
    %113 = vector.multi_reduction <maximumf>, %112, %cst_82 [2] : vector<2x16x16xf32> to vector<2x16xf32>
    %114 = vector.shape_cast %113 : vector<2x16xf32> to vector<2x16x1xf32>
    %115 = vector.broadcast %114 : vector<2x16x1xf32> to vector<2x16x16xf32>
    %116 = arith.subf %112, %115 : vector<2x16x16xf32>
    %117 = math.exp %116 : vector<2x16x16xf32>
    %cst_83 = arith.constant dense<0.000000e+00> : vector<2x16xf32>
    %118 = vector.multi_reduction <add>, %117, %cst_83 [2] : vector<2x16x16xf32> to vector<2x16xf32>
    %119 = vector.shape_cast %118 : vector<2x16xf32> to vector<2x16x1xf32>
    %120 = vector.broadcast %119 : vector<2x16x1xf32> to vector<2x16x16xf32>
    %121 = arith.divf %117, %120 : vector<2x16x16xf32>
    "tpu.trace_start"() <{level = 10 : i32, message = "bqk,bkd->bqd"}> : () -> ()
    %cst_84 = arith.constant dense<0.000000e+00> : vector<2x16x8xf32>
    %122 = tpu.matmul %121, %111, %cst_84 {dimension_numbers = #tpu.dot_dimension_numbers<[2], [1], [1], [2], [0, 0, 0, 1, 1, 2], [0], [0]>} : vector<2x16x16xf32>, vector<2x16x8xf32>, vector<2x16x8xf32> -> vector<2x16x8xf32>
    "tpu.trace_stop"() : () -> ()
    %123 = vector.shape_cast %122 : vector<2x16x8xf32> to vector<32x8xf32>
    %c2_85 = arith.constant 2 : index
    %c0_86 = arith.constant 0 : index
    %c0_87 = arith.constant 0 : index
    %124 = vector.load %arg8[%c2_85, %c0_86, %c0_87] : memref<4x8x32xf32, #tpu.memory_space<vmem>>, vector<1x8x32xf32>
    %125 = vector.shape_cast %124 : vector<1x8x32xf32> to vector<8x32xf32>
    %cst_88 = arith.constant dense<0.000000e+00> : vector<32x32xf32>
    %126 = tpu.matmul %123, %125, %cst_88 {dimension_numbers = #tpu.dot_dimension_numbers<[1], [0], [0], [1], [0, 0, 1, 1], [], []>} : vector<32x8xf32>, vector<8x32xf32>, vector<32x32xf32> -> vector<32x32xf32>
    %127 = arith.addf %85, %126 : vector<32x32xf32>
    %c3 = arith.constant 3 : index
    %c0_89 = arith.constant 0 : index
    %c0_90 = arith.constant 0 : index
    %128 = vector.load %arg2[%c3, %c0_89, %c0_90] : memref<4x32x8xf32, #tpu.memory_space<vmem>>, vector<1x32x8xf32>
    %129 = vector.shape_cast %128 : vector<1x32x8xf32> to vector<32x8xf32>
    %cst_91 = arith.constant dense<0.000000e+00> : vector<32x8xf32>
    %130 = tpu.matmul %0, %129, %cst_91 {dimension_numbers = #tpu.dot_dimension_numbers<[1], [0], [0], [1], [0, 0, 1, 1], [], []>} : vector<32x32xf32>, vector<32x8xf32>, vector<32x8xf32> -> vector<32x8xf32>
    %c3_92 = arith.constant 3 : index
    %c0_93 = arith.constant 0 : index
    %c0_94 = arith.constant 0 : index
    %131 = vector.load %arg5[%c3_92, %c0_93, %c0_94] : memref<4x1x8xf32, #tpu.memory_space<vmem>>, vector<1x1x8xf32>
    %132 = vector.shape_cast %131 : vector<1x1x8xf32> to vector<1x8xf32>
    %133 = vector.broadcast %132 : vector<1x8xf32> to vector<32x8xf32>
    %134 = arith.addf %130, %133 : vector<32x8xf32>
    %cst_95 = arith.constant 0.353553385 : f32
    %135 = vector.broadcast %cst_95 : f32 to vector<32x8xf32>
    %136 = arith.mulf %134, %135 : vector<32x8xf32>
    %c3_96 = arith.constant 3 : index
    %c0_97 = arith.constant 0 : index
    %c0_98 = arith.constant 0 : index
    %137 = vector.load %arg3[%c3_96, %c0_97, %c0_98] : memref<4x32x8xf32, #tpu.memory_space<vmem>>, vector<1x32x8xf32>
    %138 = vector.shape_cast %137 : vector<1x32x8xf32> to vector<32x8xf32>
    %cst_99 = arith.constant dense<0.000000e+00> : vector<32x8xf32>
    %139 = tpu.matmul %0, %138, %cst_99 {dimension_numbers = #tpu.dot_dimension_numbers<[1], [0], [0], [1], [0, 0, 1, 1], [], []>} : vector<32x32xf32>, vector<32x8xf32>, vector<32x8xf32> -> vector<32x8xf32>
    %c3_100 = arith.constant 3 : index
    %c0_101 = arith.constant 0 : index
    %c0_102 = arith.constant 0 : index
    %140 = vector.load %arg6[%c3_100, %c0_101, %c0_102] : memref<4x1x8xf32, #tpu.memory_space<vmem>>, vector<1x1x8xf32>
    %141 = vector.shape_cast %140 : vector<1x1x8xf32> to vector<1x8xf32>
    %142 = vector.broadcast %141 : vector<1x8xf32> to vector<32x8xf32>
    %143 = arith.addf %139, %142 : vector<32x8xf32>
    %c3_103 = arith.constant 3 : index
    %c0_104 = arith.constant 0 : index
    %c0_105 = arith.constant 0 : index
    %144 = vector.load %arg4[%c3_103, %c0_104, %c0_105] : memref<4x32x8xf32, #tpu.memory_space<vmem>>, vector<1x32x8xf32>
    %145 = vector.shape_cast %144 : vector<1x32x8xf32> to vector<32x8xf32>
    %cst_106 = arith.constant dense<0.000000e+00> : vector<32x8xf32>
    %146 = tpu.matmul %0, %145, %cst_106 {dimension_numbers = #tpu.dot_dimension_numbers<[1], [0], [0], [1], [0, 0, 1, 1], [], []>} : vector<32x32xf32>, vector<32x8xf32>, vector<32x8xf32> -> vector<32x8xf32>
    %c3_107 = arith.constant 3 : index
    %c0_108 = arith.constant 0 : index
    %c0_109 = arith.constant 0 : index
    %147 = vector.load %arg7[%c3_107, %c0_108, %c0_109] : memref<4x1x8xf32, #tpu.memory_space<vmem>>, vector<1x1x8xf32>
    %148 = vector.shape_cast %147 : vector<1x1x8xf32> to vector<1x8xf32>
    %149 = vector.broadcast %148 : vector<1x8xf32> to vector<32x8xf32>
    %150 = arith.addf %146, %149 : vector<32x8xf32>
    %151 = vector.shape_cast %136 : vector<32x8xf32> to vector<2x16x8xf32>
    %152 = vector.shape_cast %143 : vector<32x8xf32> to vector<2x16x8xf32>
    %153 = vector.shape_cast %150 : vector<32x8xf32> to vector<2x16x8xf32>
    "tpu.trace_start"() <{level = 10 : i32, message = "bqd,bkd->bqk"}> : () -> ()
    %cst_110 = arith.constant dense<0.000000e+00> : vector<2x16x16xf32>
    %154 = tpu.matmul %151, %152, %cst_110 {dimension_numbers = #tpu.dot_dimension_numbers<[2], [2], [1], [1], [0, 0, 0, 1, 1, 1], [0], [0]>} : vector<2x16x8xf32>, vector<2x16x8xf32>, vector<2x16x16xf32> -> vector<2x16x16xf32>
    "tpu.trace_stop"() : () -> ()
    %cst_111 = arith.constant dense<0xFF800000> : vector<2x16xf32>
    %155 = vector.multi_reduction <maximumf>, %154, %cst_111 [2] : vector<2x16x16xf32> to vector<2x16xf32>
    %156 = vector.shape_cast %155 : vector<2x16xf32> to vector<2x16x1xf32>
    %157 = vector.broadcast %156 : vector<2x16x1xf32> to vector<2x16x16xf32>
    %158 = arith.subf %154, %157 : vector<2x16x16xf32>
    %159 = math.exp %158 : vector<2x16x16xf32>
    %cst_112 = arith.constant dense<0.000000e+00> : vector<2x16xf32>
    %160 = vector.multi_reduction <add>, %159, %cst_112 [2] : vector<2x16x16xf32> to vector<2x16xf32>
    %161 = vector.shape_cast %160 : vector<2x16xf32> to vector<2x16x1xf32>
    %162 = vector.broadcast %161 : vector<2x16x1xf32> to vector<2x16x16xf32>
    %163 = arith.divf %159, %162 : vector<2x16x16xf32>
    "tpu.trace_start"() <{level = 10 : i32, message = "bqk,bkd->bqd"}> : () -> ()
    %cst_113 = arith.constant dense<0.000000e+00> : vector<2x16x8xf32>
    %164 = tpu.matmul %163, %153, %cst_113 {dimension_numbers = #tpu.dot_dimension_numbers<[2], [1], [1], [2], [0, 0, 0, 1, 1, 2], [0], [0]>} : vector<2x16x16xf32>, vector<2x16x8xf32>, vector<2x16x8xf32> -> vector<2x16x8xf32>
    "tpu.trace_stop"() : () -> ()
    %165 = vector.shape_cast %164 : vector<2x16x8xf32> to vector<32x8xf32>
    %c3_114 = arith.constant 3 : index
    %c0_115 = arith.constant 0 : index
    %c0_116 = arith.constant 0 : index
    %166 = vector.load %arg8[%c3_114, %c0_115, %c0_116] : memref<4x8x32xf32, #tpu.memory_space<vmem>>, vector<1x8x32xf32>
    %167 = vector.shape_cast %166 : vector<1x8x32xf32> to vector<8x32xf32>
    %cst_117 = arith.constant dense<0.000000e+00> : vector<32x32xf32>
    %168 = tpu.matmul %165, %167, %cst_117 {dimension_numbers = #tpu.dot_dimension_numbers<[1], [0], [0], [1], [0, 0, 1, 1], [], []>} : vector<32x8xf32>, vector<8x32xf32>, vector<32x32xf32> -> vector<32x32xf32>
    %169 = arith.addf %127, %168 : vector<32x32xf32>
    %c0_118 = arith.constant 0 : index
    %c0_119 = arith.constant 0 : index
    %170 = vector.load %arg9[%c0_118, %c0_119] : memref<1x32xf32, #tpu.memory_space<vmem>>, vector<1x32xf32>
    %171 = vector.broadcast %170 : vector<1x32xf32> to vector<32x32xf32>
    %172 = arith.addf %169, %171 : vector<32x32xf32>
    %173 = vector.shape_cast %172 : vector<32x32xf32> to vector<2x16x32xf32>
    %c0_120 = arith.constant 0 : index
    %c0_121 = arith.constant 0 : index
    %174 = vector.load %arg10[%c0_120, %c0_121] : memref<1x32xf32, #tpu.memory_space<vmem>>, vector<1x32xf32>
    %175 = vector.shape_cast %174 : vector<1x32xf32> to vector<1x1x32xf32>
    %176 = vector.broadcast %175 : vector<1x1x32xf32> to vector<2x16x32xf32>
    %177 = arith.mulf %173, %176 : vector<2x16x32xf32>
    %cst_122 = arith.constant dense<0.000000e+00> : vector<2x16xf32>
    %178 = vector.multi_reduction <add>, %177, %cst_122 [2] : vector<2x16x32xf32> to vector<2x16xf32>
    %c0_123 = arith.constant 0 : index
    %c0_124 = arith.constant 0 : index
    %179 = memref.load %arg11[%c0_123, %c0_124] : memref<1x1xf32, #tpu.memory_space<smem>>
    %180 = vector.broadcast %179 : f32 to vector<2x16xf32>
    %181 = arith.addf %178, %180 : vector<2x16xf32>
    %182 = arith.negf %181 : vector<2x16xf32>
    %183 = math.exp %182 : vector<2x16xf32>
    %cst_125 = arith.constant 1.000000e+00 : f32
    %184 = vector.broadcast %cst_125 : f32 to vector<2x16xf32>
    %185 = arith.addf %184, %183 : vector<2x16xf32>
    %186 = arith.divf %184, %185 : vector<2x16xf32>
    %c0_126 = arith.constant 0 : index
    %c0_127 = arith.constant 0 : index
    %187 = vector.load %arg15[%c0_126, %c0_127] : memref<2x16xf32, #tpu.memory_space<vmem>>, vector<2x16xf32>
    tpu.vector_store %arg15[%c0_126, %c0_127], %186 {strides = array<i32>} : memref<2x16xf32, #tpu.memory_space<vmem>>, vector<2x16xf32>,
    %188 = tpu.iota {dimensions = array<i32: 1>} : vector<2x16xi32>
    %cst_128 = arith.constant 0.000000e+00 : f32
    %189 = vector.broadcast %cst_128 : f32 to vector<2x16xf32>
    %cst_129 = arith.constant dense<0xFF800000> : vector<2xf32>
    %190 = vector.multi_reduction <maximumf>, %186, %cst_129 [1] : vector<2x16xf32> to vector<2xf32>
    %191 = vector.shape_cast %190 : vector<2xf32> to vector<2x1xf32>
    %192 = vector.broadcast %191 : vector<2x1xf32> to vector<2x16xf32>
    %193 = arith.cmpf oge, %186, %192 : vector<2x16xf32>
    %c16_i32 = arith.constant 16 : i32
    %194 = vector.broadcast %c16_i32 : i32 to vector<2x16xi32>
    %195 = arith.select %193, %188, %194 : vector<2x16xi1>, vector<2x16xi32>
    %cst_130 = arith.constant dense<2147483647> : vector<2xi32>
    %196 = vector.multi_reduction <minsi>, %195, %cst_130 [1] : vector<2x16xi32> to vector<2xi32>
    %197 = vector.shape_cast %196 : vector<2xi32> to vector<2x1xi32>
    %198 = vector.broadcast %197 : vector<2x1xi32> to vector<2x16xi32>
    %199 = arith.cmpi eq, %188, %198 : vector<2x16xi32>
    %200 = arith.extui %199 : vector<2x16xi1> to vector<2x16xi32>
    %201 = arith.sitofp %200 : vector<2x16xi32> to vector<2x16xf32>
    %202 = arith.addf %189, %201 : vector<2x16xf32>
    %cst_131 = arith.constant 0.000000e+00 : f32
    %203 = vector.broadcast %cst_131 : f32 to vector<2x16xf32>
    %204 = arith.cmpf ogt, %201, %203 : vector<2x16xf32>
    %cst_132 = arith.constant -1.000000e+30 : f32
    %205 = vector.broadcast %cst_132 : f32 to vector<2x16xf32>
    %206 = arith.select %204, %205, %186 : vector<2x16xi1>, vector<2x16xf32>
    %cst_133 = arith.constant dense<0xFF800000> : vector<2xf32>
    %207 = vector.multi_reduction <maximumf>, %206, %cst_133 [1] : vector<2x16xf32> to vector<2xf32>
    %208 = vector.shape_cast %207 : vector<2xf32> to vector<2x1xf32>
    %209 = vector.broadcast %208 : vector<2x1xf32> to vector<2x16xf32>
    %210 = arith.cmpf oge, %206, %209 : vector<2x16xf32>
    %c16_i32_134 = arith.constant 16 : i32
    %211 = vector.broadcast %c16_i32_134 : i32 to vector<2x16xi32>
    %212 = arith.select %210, %188, %211 : vector<2x16xi1>, vector<2x16xi32>
    %cst_135 = arith.constant dense<2147483647> : vector<2xi32>
    %213 = vector.multi_reduction <minsi>, %212, %cst_135 [1] : vector<2x16xi32> to vector<2xi32>
    %214 = vector.shape_cast %213 : vector<2xi32> to vector<2x1xi32>
    %215 = vector.broadcast %214 : vector<2x1xi32> to vector<2x16xi32>
    %216 = arith.cmpi eq, %188, %215 : vector<2x16xi32>
    %217 = arith.extui %216 : vector<2x16xi1> to vector<2x16xi32>
    %218 = arith.sitofp %217 : vector<2x16xi32> to vector<2x16xf32>
    %219 = arith.addf %202, %218 : vector<2x16xf32>
    %cst_136 = arith.constant 0.000000e+00 : f32
    %220 = vector.broadcast %cst_136 : f32 to vector<2x16xf32>
    %221 = arith.cmpf ogt, %218, %220 : vector<2x16xf32>
    %cst_137 = arith.constant -1.000000e+30 : f32
    %222 = vector.broadcast %cst_137 : f32 to vector<2x16xf32>
    %223 = arith.select %221, %222, %206 : vector<2x16xi1>, vector<2x16xf32>
    %cst_138 = arith.constant dense<0xFF800000> : vector<2xf32>
    %224 = vector.multi_reduction <maximumf>, %223, %cst_138 [1] : vector<2x16xf32> to vector<2xf32>
    %225 = vector.shape_cast %224 : vector<2xf32> to vector<2x1xf32>
    %226 = vector.broadcast %225 : vector<2x1xf32> to vector<2x16xf32>
    %227 = arith.cmpf oge, %223, %226 : vector<2x16xf32>
    %c16_i32_139 = arith.constant 16 : i32
    %228 = vector.broadcast %c16_i32_139 : i32 to vector<2x16xi32>
    %229 = arith.select %227, %188, %228 : vector<2x16xi1>, vector<2x16xi32>
    %cst_140 = arith.constant dense<2147483647> : vector<2xi32>
    %230 = vector.multi_reduction <minsi>, %229, %cst_140 [1] : vector<2x16xi32> to vector<2xi32>
    %231 = vector.shape_cast %230 : vector<2xi32> to vector<2x1xi32>
    %232 = vector.broadcast %231 : vector<2x1xi32> to vector<2x16xi32>
    %233 = arith.cmpi eq, %188, %232 : vector<2x16xi32>
    %234 = arith.extui %233 : vector<2x16xi1> to vector<2x16xi32>
    %235 = arith.sitofp %234 : vector<2x16xi32> to vector<2x16xf32>
    %236 = arith.addf %219, %235 : vector<2x16xf32>
    %cst_141 = arith.constant 0.000000e+00 : f32
    %237 = vector.broadcast %cst_141 : f32 to vector<2x16xf32>
    %238 = arith.cmpf ogt, %235, %237 : vector<2x16xf32>
    %cst_142 = arith.constant -1.000000e+30 : f32
    %239 = vector.broadcast %cst_142 : f32 to vector<2x16xf32>
    %240 = arith.select %238, %239, %223 : vector<2x16xi1>, vector<2x16xf32>
    %cst_143 = arith.constant dense<0xFF800000> : vector<2xf32>
    %241 = vector.multi_reduction <maximumf>, %240, %cst_143 [1] : vector<2x16xf32> to vector<2xf32>
    %242 = vector.shape_cast %241 : vector<2xf32> to vector<2x1xf32>
    %243 = vector.broadcast %242 : vector<2x1xf32> to vector<2x16xf32>
    %244 = arith.cmpf oge, %240, %243 : vector<2x16xf32>
    %c16_i32_144 = arith.constant 16 : i32
    %245 = vector.broadcast %c16_i32_144 : i32 to vector<2x16xi32>
    %246 = arith.select %244, %188, %245 : vector<2x16xi1>, vector<2x16xi32>
    %cst_145 = arith.constant dense<2147483647> : vector<2xi32>
    %247 = vector.multi_reduction <minsi>, %246, %cst_145 [1] : vector<2x16xi32> to vector<2xi32>
    %248 = vector.shape_cast %247 : vector<2xi32> to vector<2x1xi32>
    %249 = vector.broadcast %248 : vector<2x1xi32> to vector<2x16xi32>
    %250 = arith.cmpi eq, %188, %249 : vector<2x16xi32>
    %251 = arith.extui %250 : vector<2x16xi1> to vector<2x16xi32>
    %252 = arith.sitofp %251 : vector<2x16xi32> to vector<2x16xf32>
    %253 = arith.addf %236, %252 : vector<2x16xf32>
    %cst_146 = arith.constant 2.500000e-01 : f32
    %254 = vector.broadcast %cst_146 : f32 to vector<2x16xf32>
    %255 = arith.mulf %253, %254 : vector<2x16xf32>
    %256 = tpu.iota {dimensions = array<i32: 1>} : vector<2x32xi32>
    %257 = tpu.iota {dimensions = array<i32: 0>} : vector<2x32xi32>
    %c16_i32_147 = arith.constant 16 : i32
    %258 = vector.broadcast %c16_i32_147 : i32 to vector<2x32xi32>
    %259 = arith.muli %257, %258 : vector<2x32xi32>
    %260 = arith.cmpi sge, %256, %259 : vector<2x32xi32>
    %c16_i32_148 = arith.constant 16 : i32
    %261 = vector.broadcast %c16_i32_148 : i32 to vector<2x32xi32>
    %262 = arith.addi %259, %261 : vector<2x32xi32>
    %263 = arith.cmpi slt, %256, %262 : vector<2x32xi32>
    %264 = arith.andi %260, %263 : vector<2x32xi1>
    %265 = tpu.concatenate %255, %255 in 1 : vector<2x16xf32>, vector<2x16xf32> -> vector<2x32xf32>
    %cst_149 = arith.constant 0.000000e+00 : f32
    %266 = vector.broadcast %cst_149 : f32 to vector<2x32xf32>
    %267 = arith.select %264, %265, %266 : vector<2x32xi1>, vector<2x32xf32>
    %cst_150 = arith.constant dense<0.000000e+00> : vector<2x32xf32>
    %268 = tpu.matmul %267, %0, %cst_150 {dimension_numbers = #tpu.dot_dimension_numbers<[1], [0], [0], [1], [0, 0, 1, 1], [], []>} : vector<2x32xf32>, vector<32x32xf32>, vector<2x32xf32> -> vector<2x32xf32>
    %c0_151 = arith.constant 0 : index
    %c0_152 = arith.constant 0 : index
    %269 = vector.load %arg12[%c0_151, %c0_152] : memref<32x16xf32, #tpu.memory_space<vmem>>, vector<32x16xf32>
    %cst_153 = arith.constant dense<0.000000e+00> : vector<2x16xf32>
    %270 = tpu.matmul %268, %269, %cst_153 {dimension_numbers = #tpu.dot_dimension_numbers<[1], [0], [0], [1], [0, 0, 1, 1], [], []>} : vector<2x32xf32>, vector<32x16xf32>, vector<2x16xf32> -> vector<2x16xf32>
    %c0_154 = arith.constant 0 : index
    %c0_155 = arith.constant 0 : index
    %271 = vector.load %arg13[%c0_154, %c0_155] : memref<1x16xf32, #tpu.memory_space<vmem>>, vector<1x16xf32>
    %272 = vector.broadcast %271 : vector<1x16xf32> to vector<2x16xf32>
    %273 = arith.addf %270, %272 : vector<2x16xf32>
    %c0_156 = arith.constant 0 : index
    %c0_157 = arith.constant 0 : index
    %274 = vector.load %arg14[%c0_156, %c0_157] : memref<2x16xf32, #tpu.memory_space<vmem>>, vector<2x16xf32>
    tpu.vector_store %arg14[%c0_156, %c0_157], %273 {strides = array<i32>} : memref<2x16xf32, #tpu.memory_space<vmem>>, vector<2x16xf32>,
    return
  }
  func.func @transform_0(%arg0: i32) -> (i32, i32) {
    %c0_i32 = arith.constant 0 : i32
    %c0_i32_0 = arith.constant 0 : i32
    return %arg0, %c0_i32 : i32, i32
  }
  func.func @transform_1(%arg0: i32) -> (i32, i32, i32) {
    %c0_i32 = arith.constant 0 : i32
    %c0_i32_0 = arith.constant 0 : i32
    %c0_i32_1 = arith.constant 0 : i32
    %c0_i32_2 = arith.constant 0 : i32
    return %c0_i32, %c0_i32_0, %c0_i32_1 : i32, i32, i32
  }
  func.func @transform_2(%arg0: i32) -> (i32, i32, i32) {
    %c0_i32 = arith.constant 0 : i32
    %c0_i32_0 = arith.constant 0 : i32
    %c0_i32_1 = arith.constant 0 : i32
    %c0_i32_2 = arith.constant 0 : i32
    return %c0_i32, %c0_i32_0, %c0_i32_1 : i32, i32, i32
  }
  func.func @transform_3(%arg0: i32) -> (i32, i32, i32) {
    %c0_i32 = arith.constant 0 : i32
    %c0_i32_0 = arith.constant 0 : i32
    %c0_i32_1 = arith.constant 0 : i32
    %c0_i32_2 = arith.constant 0 : i32
    return %c0_i32, %c0_i32_0, %c0_i32_1 : i32, i32, i32
  }
  func.func @transform_4(%arg0: i32) -> (i32, i32, i32) {
    %c0_i32 = arith.constant 0 : i32
    %c0_i32_0 = arith.constant 0 : i32
    %c0_i32_1 = arith.constant 0 : i32
    %c0_i32_2 = arith.constant 0 : i32
    return %c0_i32, %c0_i32_0, %c0_i32_1 : i32, i32, i32
  }
  func.func @transform_5(%arg0: i32) -> (i32, i32, i32) {
    %c0_i32 = arith.constant 0 : i32
    %c0_i32_0 = arith.constant 0 : i32
    %c0_i32_1 = arith.constant 0 : i32
    %c0_i32_2 = arith.constant 0 : i32
    return %c0_i32, %c0_i32_0, %c0_i32_1 : i32, i32, i32
  }
  func.func @transform_6(%arg0: i32) -> (i32, i32, i32) {
    %c0_i32 = arith.constant 0 : i32
    %c0_i32_0 = arith.constant 0 : i32
    %c0_i32_1 = arith.constant 0 : i32
    %c0_i32_2 = arith.constant 0 : i32
    return %c0_i32, %c0_i32_0, %c0_i32_1 : i32, i32, i32
  }
  func.func @transform_7(%arg0: i32) -> (i32, i32, i32) {
    %c0_i32 = arith.constant 0 : i32
    %c0_i32_0 = arith.constant 0 : i32
    %c0_i32_1 = arith.constant 0 : i32
    %c0_i32_2 = arith.constant 0 : i32
    return %c0_i32, %c0_i32_0, %c0_i32_1 : i32, i32, i32
  }
  func.func @transform_8(%arg0: i32) -> (i32, i32) {
    %c0_i32 = arith.constant 0 : i32
    %c0_i32_0 = arith.constant 0 : i32
    %c0_i32_1 = arith.constant 0 : i32
    return %c0_i32, %c0_i32_0 : i32, i32
  }
  func.func @transform_9(%arg0: i32) -> (i32, i32) {
    %c0_i32 = arith.constant 0 : i32
    %c0_i32_0 = arith.constant 0 : i32
    %c0_i32_1 = arith.constant 0 : i32
    return %c0_i32, %c0_i32_0 : i32, i32
  }
  func.func @transform_10(%arg0: i32) -> (i32, i32) {
    %c0_i32 = arith.constant 0 : i32
    %c0_i32_0 = arith.constant 0 : i32
    %c0_i32_1 = arith.constant 0 : i32
    return %c0_i32, %c0_i32_0 : i32, i32
  }
  func.func @transform_11(%arg0: i32) -> (i32, i32) {
    %c0_i32 = arith.constant 0 : i32
    %c0_i32_0 = arith.constant 0 : i32
    %c0_i32_1 = arith.constant 0 : i32
    return %c0_i32, %c0_i32_0 : i32, i32
  }
  func.func @transform_12(%arg0: i32) -> (i32, i32) {
    %c0_i32 = arith.constant 0 : i32
    %c0_i32_0 = arith.constant 0 : i32
    %c0_i32_1 = arith.constant 0 : i32
    return %c0_i32, %c0_i32_0 : i32, i32
  }
  func.func @transform_13(%arg0: i32) -> (i32, i32) {
    %c0_i32 = arith.constant 0 : i32
    %c0_i32_0 = arith.constant 0 : i32
    return %arg0, %c0_i32 : i32, i32
  }
  func.func @transform_14(%arg0: i32) -> (i32, i32) {
    %c0_i32 = arith.constant 0 : i32
    %c0_i32_0 = arith.constant 0 : i32
    return %arg0, %c0_i32 : i32, i32
  }
}

</mosaic_0001>

<llo_original>
// kernel: tpu_custom_call.1
$region0: #{tpu_custom_call.1}
  #allocation0 [shape = 'u32[]', space=smem, size = 0x4, offset = 0x4, fixed_abs, tag = 'smem constant byte address 0x4 - core index']
  #allocation1 [shape = 'u32[72,128]{1,0:T(1,128)}', space=vmem, size = 0x9000, scoped, tag = 'internal scratch']
  #allocation2 [shape = 'f32[1,1]{1,0:T(1,128)S(6)}', space=smem, size = 0x200, scoped, tag = 'scoped memory for tpu_custom_call.1']
  %s0 = inlined_call_operand.vmem [shape: f32[32,32], index: 0, kind: input, shape index: {}]
  %s1 = inlined_call_operand.vmem [shape: f32[4,32,8], index: 1, kind: input, shape index: {}]
  %s2 = inlined_call_operand.vmem [shape: f32[4,32,8], index: 2, kind: input, shape index: {}]
  %s3 = inlined_call_operand.vmem [shape: f32[4,32,8], index: 3, kind: input, shape index: {}]
  %s4 = inlined_call_operand.vmem [shape: f32[4,1,8], index: 4, kind: input, shape index: {}]
  %s5 = inlined_call_operand.vmem [shape: f32[4,1,8], index: 5, kind: input, shape index: {}]
  %s6 = inlined_call_operand.vmem [shape: f32[4,1,8], index: 6, kind: input, shape index: {}]
  %s7 = inlined_call_operand.vmem [shape: f32[4,8,32], index: 7, kind: input, shape index: {}]
  %s8 = inlined_call_operand.vmem [shape: f32[1,32], index: 8, kind: input, shape index: {}]
  %s9 = inlined_call_operand.vmem [shape: f32[1,32], index: 9, kind: input, shape index: {}]
  %s10 = inlined_call_operand.<no memory space> [shape: f32[1,1], index: 10, kind: input, shape index: {}]
  %s11 = inlined_call_operand.vmem [shape: f32[32,16], index: 11, kind: input, shape index: {}]
  %s12 = inlined_call_operand.vmem [shape: f32[1,16], index: 12, kind: input, shape index: {}]
  %s13 = inlined_call_operand.hbm [shape: f32[2,16], index: 13, kind: output, shape index: {0}]
  %s14 = inlined_call_operand.hbm [shape: f32[2,16], index: 14, kind: output, shape index: {1}]
  %15 = xla_tuple %s13, %s14
  %s16 = sld [smem:[#allocation0]]
  $region70: #{tpu_custom_call.1} parent=0
    _
  %s18 = ssub.s32 1, %s16
  %s19 = scalar_select 0, %s18, %s16
  %20 = sst [smem:[#allocation2]] %s10
  $region1: #{tpu_custom_call.1} parent=0
    #allocation3 [shape = 'u8[1024]{0}', space=vmem, size = 0x400, scoped, tag = 'output window, operand 0, single buffered']
    #allocation4 [shape = 's32[1]{0}', space=sflag, size = 0x4, scoped, tag = 'scoped memory for tpu_custom_call.1']
    #allocation5 [shape = 'u8[1024]{0}', space=vmem, size = 0x400, scoped, tag = 'output window, operand 1, single buffered']
    #allocation6 [shape = 's32[1]{0}', space=sflag, size = 0x4, scoped, tag = 'scoped memory for tpu_custom_call.1']
    %21 = vsyncpa [#allocation4], 0
    %22 = vsyncpa [#allocation6], 0
    // Predicated region
    $region2: #{tpu_custom_call.1} parent=1 // pred_check
      _
    $region3: #{tpu_custom_call.1} parent=1 // pred_check_branch
      %24 = sbr.rel (0) target = $region5
    $region4: #{tpu_custom_call.1} parent=1 // pred_region
      _
    $region5: #{tpu_custom_call.1} parent=1 // pred_fallthru
      _
    // Predicated region
    $region6: #{tpu_custom_call.1} parent=1 // pred_check
      _
    $region7: #{tpu_custom_call.1} parent=1 // pred_check_branch
      %26 = sbr.rel (0) target = $region9
    $region8: #{tpu_custom_call.1} parent=1 // pred_region
      _
    $region9: #{tpu_custom_call.1} parent=1 // pred_fallthru
      _
    // Predicated region
    $region10: #{tpu_custom_call.1} parent=1 // pred_check
      _
    $region11: #{tpu_custom_call.1} parent=1 // pred_check_branch
      %28 = sbr.rel (0) target = $region13
    $region12: #{tpu_custom_call.1} parent=1 // pred_region
      _
    $region13: #{tpu_custom_call.1} parent=1 // pred_fallthru
      _
    // Predicated region
    $region14: #{tpu_custom_call.1} parent=1 // pred_check
      _
    $region15: #{tpu_custom_call.1} parent=1 // pred_check_branch
      %30 = sbr.rel (0) target = $region17
    $region16: #{tpu_custom_call.1} parent=1 // pred_region
      _
    $region17: #{tpu_custom_call.1} parent=1 // pred_fallthru
      _
    // Predicated region
    $region18: #{tpu_custom_call.1} parent=1 // pred_check
      _
    $region19: #{tpu_custom_call.1} parent=1 // pred_check_branch
      %32 = sbr.rel (0) target = $region21
    $region20: #{tpu_custom_call.1} parent=1 // pred_region
      _
    $region21: #{tpu_custom_call.1} parent=1 // pred_fallthru
      _
    // Predicated region
    $region22: #{tpu_custom_call.1} parent=1 // pred_check
      _
    $region23: #{tpu_custom_call.1} parent=1 // pred_check_branch
      %34 = sbr.rel (0) target = $region25
    $region24: #{tpu_custom_call.1} parent=1 // pred_region
      _
    $region25: #{tpu_custom_call.1} parent=1 // pred_fallthru
      _
    // Predicated region
    $region26: #{tpu_custom_call.1} parent=1 // pred_check
      _
    $region27: #{tpu_custom_call.1} parent=1 // pred_check_branch
      %36 = sbr.rel (0) target = $region29
    $region28: #{tpu_custom_call.1} parent=1 // pred_region
      _
    $region29: #{tpu_custom_call.1} parent=1 // pred_fallthru
      _
    // Predicated region
    $region30: #{tpu_custom_call.1} parent=1 // pred_check
      _
    $region31: #{tpu_custom_call.1} parent=1 // pred_check_branch
      %38 = sbr.rel (0) target = $region33
    $region32: #{tpu_custom_call.1} parent=1 // pred_region
      _
    $region33: #{tpu_custom_call.1} parent=1 // pred_fallthru
      _
    // Predicated region
    $region34: #{tpu_custom_call.1} parent=1 // pred_check
      _
    $region35: #{tpu_custom_call.1} parent=1 // pred_check_branch
      %40 = sbr.rel (0) target = $region37
    $region36: #{tpu_custom_call.1} parent=1 // pred_region
      _
    $region37: #{tpu_custom_call.1} parent=1 // pred_fallthru
      _
    // Predicated region
    $region38: #{tpu_custom_call.1} parent=1 // pred_check
      _
    $region39: #{tpu_custom_call.1} parent=1 // pred_check_branch
      %42 = sbr.rel (0) target = $region41
    $region40: #{tpu_custom_call.1} parent=1 // pred_region
      _
    $region41: #{tpu_custom_call.1} parent=1 // pred_fallthru
      _
    // Predicated region
    $region42: #{tpu_custom_call.1} parent=1 // pred_check
      _
    $region43: #{tpu_custom_call.1} parent=1 // pred_check_branch
      %44 = sbr.rel (0) target = $region45
    $region44: #{tpu_custom_call.1} parent=1 // pred_region
      _
    $region45: #{tpu_custom_call.1} parent=1 // pred_fallthru
      _
    // Predicated region
    $region46: #{tpu_custom_call.1} parent=1 // pred_check
      _
    $region47: #{tpu_custom_call.1} parent=1 // pred_check_branch
      %46 = sbr.rel (0) target = $region49
    $region48: #{tpu_custom_call.1} parent=1 // pred_region
      _
    $region49: #{tpu_custom_call.1} parent=1 // pred_fallthru
      _
    // Predicated region
    $region50: #{tpu_custom_call.1} parent=1 // pred_check
      _
    $region51: #{tpu_custom_call.1} parent=1 // pred_check_branch
      %48 = sbr.rel (0) target = $region53
    $region52: #{tpu_custom_call.1} parent=1 // pred_region
      _
    $region53: #{tpu_custom_call.1} parent=1 // pred_fallthru
      _
    %v49 = vld [vmem:[%s0] sm:$0xff]
    %v50 = vld [vmem:[%s0 + $0x8] sm:$0xff]
    %v51 = vld [vmem:[%s0 + $0x10] sm:$0xff]
    %v52 = vld [vmem:[%s0 + $0x18] sm:$0xff]
    %v53 = vld [vmem:[%s1] sm:$0xff]
    %v54 = vld [vmem:[%s1 + $0x8] sm:$0xff]
    %v55 = vld [vmem:[%s1 + $0x10] sm:$0xff]
    %v56 = vld [vmem:[%s1 + $0x18] sm:$0xff]
    %v57 = vld [vmem:[%s4] sm:$0x1]
    %v59 = vperm.slane %v57, 0
    %vm61 = vcmask 261120
    %v63 = vsel %vm61, %v49, 0
    %v66 = vsel %vm61, %v50, 0
    %v69 = vsel %vm61, %v51, 0
    %v72 = vsel %vm61, %v52, 0
    %74 = vmatpush.msra.mxu0 0.0
    %75 = vmatpush.msra.mxu0 0.0
    %76 = vmatpush.msra.mxu0 0.0
    %77 = vmatpush.msra.mxu0 0.0
    %78 = vmatpush.msra.mxu0 0.0
    %79 = vmatpush.msra.mxu0 0.0
    %80 = vmatpush.msra.mxu0 0.0
    %81 = vmatpush.msra.mxu0 0.0
    %82 = vmatpush.msra.mxu0 0.0
    %83 = vmatpush.msra.mxu0 0.0
    %84 = vmatpush.msra.mxu0 0.0
    %85 = vmatpush.msra.mxu0 0.0
    %86 = vmatpush.msra.mxu0 %v56
    %87 = vmatpush.msra.mxu0 %v55
    %88 = vmatpush.msra.mxu0 %v54
    %89 = vmatpush.msra.mxu0 %v53
    %90 = vmatmul.f32.gmra.mxu0 %v63
    %v91 = vpop.f32.mrf.mxu0
    %v92 = vadd.f32 %v59, %v91
    %93 = vmatmul.f32.gmra.mxu0 %v66
    %v94 = vpop.f32.mrf.mxu0
    %v95 = vadd.f32 %v59, %v94
    %96 = vmatmul.f32.gmra.mxu0 %v69
    %v97 = vpop.f32.mrf.mxu0
    %v98 = vadd.f32 %v59, %v97
    %99 = vmatmul.f32.gmra.mxu0 %v72
    %v100 = vpop.f32.mrf.mxu0
    %v101 = vadd.f32 %v59, %v100
    %102 = vdwg.mxu0
    %v103 = vmul.f32 %v92, 0.35355338
    %v104 = vmul.f32 %v95, 0.35355338
    %v105 = vmul.f32 %v98, 0.35355338
    %v106 = vmul.f32 %v101, 0.35355338
    %v107 = vld [vmem:[%s2] sm:$0xff]
    %v108 = vld [vmem:[%s2 + $0x8] sm:$0xff]
    %v109 = vld [vmem:[%s2 + $0x10] sm:$0xff]
    %v110 = vld [vmem:[%s2 + $0x18] sm:$0xff]
    %v111 = vld [vmem:[%s5] sm:$0x1]
    %v113 = vperm.slane %v111, 0
    %115 = vmatpush.msra.mxu0 0.0
    %116 = vmatpush.msra.mxu0 0.0
    %117 = vmatpush.msra.mxu0 0.0
    %118 = vmatpush.msra.mxu0 0.0
    %119 = vmatpush.msra.mxu0 0.0
    %120 = vmatpush.msra.mxu0 0.0
    %121 = vmatpush.msra.mxu0 0.0
    %122 = vmatpush.msra.mxu0 0.0
    %123 = vmatpush.msra.mxu0 0.0
    %124 = vmatpush.msra.mxu0 0.0
    %125 = vmatpush.msra.mxu0 0.0
    %126 = vmatpush.msra.mxu0 0.0
    %127 = vmatpush.msra.mxu0 %v110
    %128 = vmatpush.msra.mxu0 %v109
    %129 = vmatpush.msra.mxu0 %v108
    %130 = vmatpush.msra.mxu0 %v107
    %131 = vmatmul.f32.gmra.mxu0 %v63
    %v132 = vpop.f32.mrf.mxu0
    %v133 = vadd.f32 %v113, %v132
    %134 = vmatmul.f32.gmra.mxu0 %v66
    %v135 = vpop.f32.mrf.mxu0
    %v136 = vadd.f32 %v113, %v135
    %137 = vmatmul.f32.gmra.mxu0 %v69
    %v138 = vpop.f32.mrf.mxu0
    %v139 = vadd.f32 %v113, %v138
    %140 = vmatmul.f32.gmra.mxu0 %v72
    %v141 = vpop.f32.mrf.mxu0
    %v142 = vadd.f32 %v113, %v141
    %143 = vdwg.mxu0
    %v144 = vld [vmem:[%s3] sm:$0xff]
    %v145 = vld [vmem:[%s3 + $0x8] sm:$0xff]
    %v146 = vld [vmem:[%s3 + $0x10] sm:$0xff]
    %v147 = vld [vmem:[%s3 + $0x18] sm:$0xff]
    %v148 = vld [vmem:[%s6] sm:$0x1]
    %v150 = vperm.slane %v148, 0
    %152 = vmatpush.msra.mxu0 0.0
    %153 = vmatpush.msra.mxu0 0.0
    %154 = vmatpush.msra.mxu0 0.0
    %155 = vmatpush.msra.mxu0 0.0
    %156 = vmatpush.msra.mxu0 0.0
    %157 = vmatpush.msra.mxu0 0.0
    %158 = vmatpush.msra.mxu0 0.0
    %159 = vmatpush.msra.mxu0 0.0
    %160 = vmatpush.msra.mxu0 0.0
    %161 = vmatpush.msra.mxu0 0.0
    %162 = vmatpush.msra.mxu0 0.0
    %163 = vmatpush.msra.mxu0 0.0
    %164 = vmatpush.msra.mxu0 %v147
    %165 = vmatpush.msra.mxu0 %v146
    %166 = vmatpush.msra.mxu0 %v145
    %167 = vmatpush.msra.mxu0 %v144
    %168 = vmatmul.f32.gmra.mxu0 %v63
    %v169 = vpop.f32.mrf.mxu0
    %v170 = vadd.f32 %v150, %v169
    %171 = vmatmul.f32.gmra.mxu0 %v66
    %v172 = vpop.f32.mrf.mxu0
    %v173 = vadd.f32 %v150, %v172
    %174 = vmatmul.f32.gmra.mxu0 %v69
    %v175 = vpop.f32.mrf.mxu0
    %v176 = vadd.f32 %v150, %v175
    %177 = vmatmul.f32.gmra.mxu0 %v72
    %v178 = vpop.f32.mrf.mxu0
    %v179 = vadd.f32 %v150, %v178
    %180 = vdwg.mxu0
    %vm181 = vcmask 64512
    %v183 = vsel %vm181, %v103, 0
    %v186 = vsel %vm181, %v104, 0
    %v189 = vsel %vm181, %v133, 0
    %v192 = vsel %vm181, %v136, 0
    %194 = vmatpush.xpose.msra.mxu0 0.0
    %195 = vmatpush.xpose.msra.mxu0 0.0
    %196 = vmatpush.xpose.msra.mxu0 0.0
    %197 = vmatpush.xpose.msra.mxu0 0.0
    %198 = vmatpush.xpose.msra.mxu0 0.0
    %199 = vmatpush.xpose.msra.mxu0 0.0
    %200 = vmatpush.xpose.msra.mxu0 0.0
    %201 = vmatpush.xpose.msra.mxu0 0.0
    %202 = vmatpush.xpose.msra.mxu0 0.0
    %203 = vmatpush.xpose.msra.mxu0 0.0
    %204 = vmatpush.xpose.msra.mxu0 0.0
    %205 = vmatpush.xpose.msra.mxu0 0.0
    %206 = vmatpush.xpose.msra.mxu0 0.0
    %207 = vmatpush.xpose.msra.mxu0 0.0
    %208 = vmatpush.xpose.msra.mxu0 %v192
    %209 = vmatpush.xpose.msra.mxu0 %v189
    %210 = vmatmul.f32.gmra.mxu0 %v183
    %v211 = vpop.f32.mrf.mxu0
    %v212 = vadd.f32 0.0, %v211
    %213 = vmatmul.f32.gmra.mxu0 %v186
    %v214 = vpop.f32.mrf.mxu0
    %v215 = vadd.f32 0.0, %v214
    %216 = vdwg.mxu0
    %v218 = vsel %vm181, %v105, 0
    %v221 = vsel %vm181, %v106, 0
    %v224 = vsel %vm181, %v139, 0
    %v227 = vsel %vm181, %v142, 0
    %229 = vmatpush.xpose.msra.mxu0 0.0
    %230 = vmatpush.xpose.msra.mxu0 0.0
    %231 = vmatpush.xpose.msra.mxu0 0.0
    %232 = vmatpush.xpose.msra.mxu0 0.0
    %233 = vmatpush.xpose.msra.mxu0 0.0
    %234 = vmatpush.xpose.msra.mxu0 0.0
    %235 = vmatpush.xpose.msra.mxu0 0.0
    %236 = vmatpush.xpose.msra.mxu0 0.0
    %237 = vmatpush.xpose.msra.mxu0 0.0
    %238 = vmatpush.xpose.msra.mxu0 0.0
    %239 = vmatpush.xpose.msra.mxu0 0.0
    %240 = vmatpush.xpose.msra.mxu0 0.0
    %241 = vmatpush.xpose.msra.mxu0 0.0
    %242 = vmatpush.xpose.msra.mxu0 0.0
    %243 = vmatpush.xpose.msra.mxu0 %v227
    %244 = vmatpush.xpose.msra.mxu0 %v224
    %245 = vmatmul.f32.gmra.mxu0 %v218
    %v246 = vpop.f32.mrf.mxu0
    %v247 = vadd.f32 0.0, %v246
    %248 = vmatmul.f32.gmra.mxu0 %v221
    %v249 = vpop.f32.mrf.mxu0
    %v250 = vadd.f32 0.0, %v249
    %251 = vdwg.mxu0
    %vm252 = vcmask 130048
    %v253 = vsel %vm252, %v212, -inf
    %254 = vmax.xlane.f32.xlu0 %v253
    %v255 = vpop.xlane.xlu0 %254
    %v256 = vsel %vm252, %v215, -inf
    %257 = vmax.xlane.f32.xlu0 %v256
    %v258 = vpop.xlane.xlu0 %257
    %v259 = vsel %vm252, %v247, -inf
    %260 = vmax.xlane.f32.xlu0 %v259
    %v261 = vpop.xlane.xlu0 %260
    %v262 = vsel %vm252, %v250, -inf
    %263 = vmax.xlane.f32.xlu0 %v262
    %v264 = vpop.xlane.xlu0 %263
    %v265 = vsub.f32 %v212, %v255
    %v266 = vsub.f32 %v215, %v258
    %v267 = vsub.f32 %v247, %v261
    %v268 = vsub.f32 %v250, %v264
    %v269 = vmul.f32 %v265, 1.442695
    %v270 = vpow.pop %v269
    %v271 = vmul.f32 %v266, 1.442695
    %v272 = vpow.pop %v271
    %v273 = vmul.f32 %v267, 1.442695
    %v274 = vpow.pop %v273
    %v275 = vmul.f32 %v268, 1.442695
    %v276 = vpow.pop %v275
    %v277 = vsel %vm252, %v270, 0.0
    %278 = vadd.xlane.f32.xlu0 %v277
    %v279 = vpop.xlane.xlu0 %278
    %v280 = vsel %vm252, %v272, 0.0
    %281 = vadd.xlane.f32.xlu0 %v280
    %v282 = vpop.xlane.xlu0 %281
    %v283 = vsel %vm252, %v274, 0.0
    %284 = vadd.xlane.f32.xlu0 %v283
    %v285 = vpop.xlane.xlu0 %284
    %v286 = vsel %vm252, %v276, 0.0
    %287 = vadd.xlane.f32.xlu0 %v286
    %v288 = vpop.xlane.xlu0 %287
    %v289 = vrcp.pop %v279
    %v290 = vmul.f32 %v279, %v289
    %v291 = vsub.f32 1.0, %v290
    %v292 = vmul.f32 %v289, %v291
    %v293 = vadd.f32 %v289, %v292
    %vm294 = vweird.f32 %v279
    %vm295 = vweird.f32 %v289
    %vm296 = vmor %vm294, %vm295
    %v297 = vsel %vm296, %v289, %v293
    %v298 = vand.u32 2147483647, %v279
    %vm299 = vcmp.eq.f32.partialorder %v298, 8.507059e+37
    %v300 = vand.u32 %v279, 2147483648
    %v301 = vor.u32 1.1754944e-38, %v300
    %v302 = vsel %vm299, %v301, %v297
    %v303 = vmul.f32 %v270, %v302
    %v304 = vrcp.pop %v282
    %v305 = vmul.f32 %v282, %v304
    %v306 = vsub.f32 1.0, %v305
    %v307 = vmul.f32 %v304, %v306
    %v308 = vadd.f32 %v304, %v307
    %vm309 = vweird.f32 %v282
    %vm310 = vweird.f32 %v304
    %vm311 = vmor %vm309, %vm310
    %v312 = vsel %vm311, %v304, %v308
    %v313 = vand.u32 2147483647, %v282
    %vm314 = vcmp.eq.f32.partialorder %v313, 8.507059e+37
    %v315 = vand.u32 %v282, 2147483648
    %v316 = vor.u32 1.1754944e-38, %v315
    %v317 = vsel %vm314, %v316, %v312
    %v318 = vmul.f32 %v272, %v317
    %v319 = vrcp.pop %v285
    %v320 = vmul.f32 %v285, %v319
    %v321 = vsub.f32 1.0, %v320
    %v322 = vmul.f32 %v319, %v321
    %v323 = vadd.f32 %v319, %v322
    %vm324 = vweird.f32 %v285
    %vm325 = vweird.f32 %v319
    %vm326 = vmor %vm324, %vm325
    %v327 = vsel %vm326, %v319, %v323
    %v328 = vand.u32 2147483647, %v285
    %vm329 = vcmp.eq.f32.partialorder %v328, 8.507059e+37
    %v330 = vand.u32 %v285, 2147483648
    %v331 = vor.u32 1.1754944e-38, %v330
    %v332 = vsel %vm329, %v331, %v327
    %v333 = vmul.f32 %v274, %v332
    %v334 = vrcp.pop %v288
    %v335 = vmul.f32 %v288, %v334
    %v336 = vsub.f32 1.0, %v335
    %v337 = vmul.f32 %v334, %v336
    %v338 = vadd.f32 %v334, %v337
    %vm339 = vweird.f32 %v288
    %vm340 = vweird.f32 %v334
    %vm341 = vmor %vm339, %vm340
    %v342 = vsel %vm341, %v334, %v338
    %v343 = vand.u32 2147483647, %v288
    %vm344 = vcmp.eq.f32.partialorder %v343, 8.507059e+37
    %v345 = vand.u32 %v288, 2147483648
    %v346 = vor.u32 1.1754944e-38, %v345
    %v347 = vsel %vm344, %v346, %v342
    %v348 = vmul.f32 %v276, %v347
    %v350 = vsel %vm252, %v303, 0
    %v353 = vsel %vm252, %v318, 0
    %355 = vmatpush.msra.mxu0 0.0
    %356 = vmatpush.msra.mxu0 0.0
    %357 = vmatpush.msra.mxu0 0.0
    %358 = vmatpush.msra.mxu0 0.0
    %359 = vmatpush.msra.mxu0 0.0
    %360 = vmatpush.msra.mxu0 0.0
    %361 = vmatpush.msra.mxu0 0.0
    %362 = vmatpush.msra.mxu0 0.0
    %363 = vmatpush.msra.mxu0 0.0
    %364 = vmatpush.msra.mxu0 0.0
    %365 = vmatpush.msra.mxu0 0.0
    %366 = vmatpush.msra.mxu0 0.0
    %367 = vmatpush.msra.mxu0 0.0
    %368 = vmatpush.msra.mxu0 0.0
    %369 = vmatpush.msra.mxu0 %v173
    %370 = vmatpush.msra.mxu0 %v170
    %371 = vmatmul.f32.gmra.mxu0 %v350
    %v372 = vpop.f32.mrf.mxu0
    %v373 = vadd.f32 0.0, %v372
    %374 = vmatmul.f32.gmra.mxu0 %v353
    %v375 = vpop.f32.mrf.mxu0
    %v376 = vadd.f32 0.0, %v375
    %377 = vdwg.mxu0
    %v379 = vsel %vm252, %v333, 0
    %v382 = vsel %vm252, %v348, 0
    %384 = vmatpush.msra.mxu0 0.0
    %385 = vmatpush.msra.mxu0 0.0
    %386 = vmatpush.msra.mxu0 0.0
    %387 = vmatpush.msra.mxu0 0.0
    %388 = vmatpush.msra.mxu0 0.0
    %389 = vmatpush.msra.mxu0 0.0
    %390 = vmatpush.msra.mxu0 0.0
    %391 = vmatpush.msra.mxu0 0.0
    %392 = vmatpush.msra.mxu0 0.0
    %393 = vmatpush.msra.mxu0 0.0
    %394 = vmatpush.msra.mxu0 0.0
    %395 = vmatpush.msra.mxu0 0.0
    %396 = vmatpush.msra.mxu0 0.0
    %397 = vmatpush.msra.mxu0 0.0
    %398 = vmatpush.msra.mxu0 %v179
    %399 = vmatpush.msra.mxu0 %v176
    %400 = vmatmul.f32.gmra.mxu0 %v379
    %v401 = vpop.f32.mrf.mxu0
    %v402 = vadd.f32 0.0, %v401
    %403 = vmatmul.f32.gmra.mxu0 %v382
    %v404 = vpop.f32.mrf.mxu0
    %v405 = vadd.f32 0.0, %v404
    %406 = vdwg.mxu0
    %v407 = vld [vmem:[%s7] sm:$0xff]
    %s408 = scalar_lea.vmem %s1, 32
    %v409 = vld [vmem:[%s408] sm:$0xff]
    %v410 = vld [vmem:[%s408 + $0x8] sm:$0xff]
    %v411 = vld [vmem:[%s408 + $0x10] sm:$0xff]
    %v412 = vld [vmem:[%s408 + $0x18] sm:$0xff]
    %s413 = scalar_lea.vmem %s4, 1
    %v414 = vld [vmem:[%s413] sm:$0x1]
    %v416 = vperm.slane %v414, 0
    %418 = vmatpush.msra.mxu0 0.0
    %419 = vmatpush.msra.mxu0 0.0
    %420 = vmatpush.msra.mxu0 0.0
    %421 = vmatpush.msra.mxu0 0.0
    %422 = vmatpush.msra.mxu0 0.0
    %423 = vmatpush.msra.mxu0 0.0
    %424 = vmatpush.msra.mxu0 0.0
    %425 = vmatpush.msra.mxu0 0.0
    %426 = vmatpush.msra.mxu0 0.0
    %427 = vmatpush.msra.mxu0 0.0
    %428 = vmatpush.msra.mxu0 0.0
    %429 = vmatpush.msra.mxu0 0.0
    %430 = vmatpush.msra.mxu0 %v412
    %431 = vmatpush.msra.mxu0 %v411
    %432 = vmatpush.msra.mxu0 %v410
    %433 = vmatpush.msra.mxu0 %v409
    %434 = vmatmul.f32.gmra.mxu0 %v63
    %v435 = vpop.f32.mrf.mxu0
    %v436 = vadd.f32 %v416, %v435
    %437 = vmatmul.f32.gmra.mxu0 %v66
    %v438 = vpop.f32.mrf.mxu0
    %v439 = vadd.f32 %v416, %v438
    %440 = vmatmul.f32.gmra.mxu0 %v69
    %v441 = vpop.f32.mrf.mxu0
    %v442 = vadd.f32 %v416, %v441
    %443 = vmatmul.f32.gmra.mxu0 %v72
    %v444 = vpop.f32.mrf.mxu0
    %v445 = vadd.f32 %v416, %v444
    %446 = vdwg.mxu0
    %v447 = vmul.f32 %v436, 0.35355338
    %v448 = vmul.f32 %v439, 0.35355338
    %v449 = vmul.f32 %v442, 0.35355338
    %v450 = vmul.f32 %v445, 0.35355338
    %s451 = scalar_lea.vmem %s2, 32
    %v452 = vld [vmem:[%s451] sm:$0xff]
    %v453 = vld [vmem:[%s451 + $0x8] sm:$0xff]
    %v454 = vld [vmem:[%s451 + $0x10] sm:$0xff]
    %v455 = vld [vmem:[%s451 + $0x18] sm:$0xff]
    %s456 = scalar_lea.vmem %s5, 1
    %v457 = vld [vmem:[%s456] sm:$0x1]
    %v459 = vperm.slane %v457, 0
    %461 = vmatpush.msra.mxu0 0.0
    %462 = vmatpush.msra.mxu0 0.0
    %463 = vmatpush.msra.mxu0 0.0
    %464 = vmatpush.msra.mxu0 0.0
    %465 = vmatpush.msra.mxu0 0.0
    %466 = vmatpush.msra.mxu0 0.0
    %467 = vmatpush.msra.mxu0 0.0
    %468 = vmatpush.msra.mxu0 0.0
    %469 = vmatpush.msra.mxu0 0.0
    %470 = vmatpush.msra.mxu0 0.0
    %471 = vmatpush.msra.mxu0 0.0
    %472 = vmatpush.msra.mxu0 0.0
    %473 = vmatpush.msra.mxu0 %v455
    %474 = vmatpush.msra.mxu0 %v454
    %475 = vmatpush.msra.mxu0 %v453
    %476 = vmatpush.msra.mxu0 %v452
    %477 = vmatmul.f32.gmra.mxu0 %v63
    %v478 = vpop.f32.mrf.mxu0
    %v479 = vadd.f32 %v459, %v478
    %480 = vmatmul.f32.gmra.mxu0 %v66
    %v481 = vpop.f32.mrf.mxu0
    %v482 = vadd.f32 %v459, %v481
    %483 = vmatmul.f32.gmra.mxu0 %v69
    %v484 = vpop.f32.mrf.mxu0
    %v485 = vadd.f32 %v459, %v484
    %486 = vmatmul.f32.gmra.mxu0 %v72
    %v487 = vpop.f32.mrf.mxu0
    %v488 = vadd.f32 %v459, %v487
    %489 = vdwg.mxu0
    %s490 = scalar_lea.vmem %s3, 32
    %v491 = vld [vmem:[%s490] sm:$0xff]
    %v492 = vld [vmem:[%s490 + $0x8] sm:$0xff]
    %v493 = vld [vmem:[%s490 + $0x10] sm:$0xff]
    %v494 = vld [vmem:[%s490 + $0x18] sm:$0xff]
    %s495 = scalar_lea.vmem %s6, 1
    %v496 = vld [vmem:[%s495] sm:$0x1]
    %v498 = vperm.slane %v496, 0
    %500 = vmatpush.msra.mxu0 0.0
    %501 = vmatpush.msra.mxu0 0.0
    %502 = vmatpush.msra.mxu0 0.0
    %503 = vmatpush.msra.mxu0 0.0
    %504 = vmatpush.msra.mxu0 0.0
    %505 = vmatpush.msra.mxu0 0.0
    %506 = vmatpush.msra.mxu0 0.0
    %507 = vmatpush.msra.mxu0 0.0
    %508 = vmatpush.msra.mxu0 0.0
    %509 = vmatpush.msra.mxu0 0.0
    %510 = vmatpush.msra.mxu0 0.0
    %511 = vmatpush.msra.mxu0 0.0
    %512 = vmatpush.msra.mxu0 %v494
    %513 = vmatpush.msra.mxu0 %v493
    %514 = vmatpush.msra.mxu0 %v492
    %515 = vmatpush.msra.mxu0 %v491
    %516 = vmatmul.f32.gmra.mxu0 %v63
    %v517 = vpop.f32.mrf.mxu0
    %v518 = vadd.f32 %v498, %v517
    %519 = vmatmul.f32.gmra.mxu0 %v66
    %v520 = vpop.f32.mrf.mxu0
    %v521 = vadd.f32 %v498, %v520
    %522 = vmatmul.f32.gmra.mxu0 %v69
    %v523 = vpop.f32.mrf.mxu0
    %v524 = vadd.f32 %v498, %v523
    %525 = vmatmul.f32.gmra.mxu0 %v72
    %v526 = vpop.f32.mrf.mxu0
    %v527 = vadd.f32 %v498, %v526
    %528 = vdwg.mxu0
    %v530 = vsel %vm181, %v447, 0
    %v533 = vsel %vm181, %v448, 0
    %v536 = vsel %vm181, %v479, 0
    %v539 = vsel %vm181, %v482, 0
    %541 = vmatpush.xpose.msra.mxu0 0.0
    %542 = vmatpush.xpose.msra.mxu0 0.0
    %543 = vmatpush.xpose.msra.mxu0 0.0
    %544 = vmatpush.xpose.msra.mxu0 0.0
    %545 = vmatpush.xpose.msra.mxu0 0.0
    %546 = vmatpush.xpose.msra.mxu0 0.0
    %547 = vmatpush.xpose.msra.mxu0 0.0
    %548 = vmatpush.xpose.msra.mxu0 0.0
    %549 = vmatpush.xpose.msra.mxu0 0.0
    %550 = vmatpush.xpose.msra.mxu0 0.0
    %551 = vmatpush.xpose.msra.mxu0 0.0
    %552 = vmatpush.xpose.msra.mxu0 0.0
    %553 = vmatpush.xpose.msra.mxu0 0.0
    %554 = vmatpush.xpose.msra.mxu0 0.0
    %555 = vmatpush.xpose.msra.mxu0 %v539
    %556 = vmatpush.xpose.msra.mxu0 %v536
    %557 = vmatmul.f32.gmra.mxu0 %v530
    %v558 = vpop.f32.mrf.mxu0
    %v559 = vadd.f32 0.0, %v558
    %560 = vmatmul.f32.gmra.mxu0 %v533
    %v561 = vpop.f32.mrf.mxu0
    %v562 = vadd.f32 0.0, %v561
    %563 = vdwg.mxu0
    %v565 = vsel %vm181, %v449, 0
    %v568 = vsel %vm181, %v450, 0
    %v571 = vsel %vm181, %v485, 0
    %v574 = vsel %vm181, %v488, 0
    %576 = vmatpush.xpose.msra.mxu0 0.0
    %577 = vmatpush.xpose.msra.mxu0 0.0
    %578 = vmatpush.xpose.msra.mxu0 0.0
    %579 = vmatpush.xpose.msra.mxu0 0.0
    %580 = vmatpush.xpose.msra.mxu0 0.0
    %581 = vmatpush.xpose.msra.mxu0 0.0
    %582 = vmatpush.xpose.msra.mxu0 0.0
    %583 = vmatpush.xpose.msra.mxu0 0.0
    %584 = vmatpush.xpose.msra.mxu0 0.0
    %585 = vmatpush.xpose.msra.mxu0 0.0
    %586 = vmatpush.xpose.msra.mxu0 0.0
    %587 = vmatpush.xpose.msra.mxu0 0.0
    %588 = vmatpush.xpose.msra.mxu0 0.0
    %589 = vmatpush.xpose.msra.mxu0 0.0
    %590 = vmatpush.xpose.msra.mxu0 %v574
    %591 = vmatpush.xpose.msra.mxu0 %v571
    %592 = vmatmul.f32.gmra.mxu0 %v565
    %v593 = vpop.f32.mrf.mxu0
    %v594 = vadd.f32 0.0, %v593
    %595 = vmatmul.f32.gmra.mxu0 %v568
    %v596 = vpop.f32.mrf.mxu0
    %v597 = vadd.f32 0.0, %v596
    %598 = vdwg.mxu0
    %v599 = vsel %vm252, %v559, -inf
    %600 = vmax.xlane.f32.xlu0 %v599
    %v601 = vpop.xlane.xlu0 %600
    %v602 = vsel %vm252, %v562, -inf
    %603 = vmax.xlane.f32.xlu0 %v602
    %v604 = vpop.xlane.xlu0 %603
    %v605 = vsel %vm252, %v594, -inf
    %606 = vmax.xlane.f32.xlu0 %v605
    %v607 = vpop.xlane.xlu0 %606
    %v608 = vsel %vm252, %v597, -inf
    %609 = vmax.xlane.f32.xlu0 %v608
    %v610 = vpop.xlane.xlu0 %609
    %v611 = vsub.f32 %v559, %v601
    %v612 = vsub.f32 %v562, %v604
    %v613 = vsub.f32 %v594, %v607
    %v614 = vsub.f32 %v597, %v610
    %v615 = vmul.f32 %v611, 1.442695
    %v616 = vpow.pop %v615
    %v617 = vmul.f32 %v612, 1.442695
    %v618 = vpow.pop %v617
    %v619 = vmul.f32 %v613, 1.442695
    %v620 = vpow.pop %v619
    %v621 = vmul.f32 %v614, 1.442695
    %v622 = vpow.pop %v621
    %v623 = vsel %vm252, %v616, 0.0
    %624 = vadd.xlane.f32.xlu0 %v623
    %v625 = vpop.xlane.xlu0 %624
    %v626 = vsel %vm252, %v618, 0.0
    %627 = vadd.xlane.f32.xlu0 %v626
    %v628 = vpop.xlane.xlu0 %627
    %v629 = vsel %vm252, %v620, 0.0
    %630 = vadd.xlane.f32.xlu0 %v629
    %v631 = vpop.xlane.xlu0 %630
    %v632 = vsel %vm252, %v622, 0.0
    %633 = vadd.xlane.f32.xlu0 %v632
    %v634 = vpop.xlane.xlu0 %633
    %v635 = vrcp.pop %v625
    %v636 = vmul.f32 %v625, %v635
    %v637 = vsub.f32 1.0, %v636
    %v638 = vmul.f32 %v635, %v637
    %v639 = vadd.f32 %v635, %v638
    %vm640 = vweird.f32 %v625
    %vm641 = vweird.f32 %v635
    %vm642 = vmor %vm640, %vm641
    %v643 = vsel %vm642, %v635, %v639
    %v644 = vand.u32 2147483647, %v625
    %vm645 = vcmp.eq.f32.partialorder %v644, 8.507059e+37
    %v646 = vand.u32 %v625, 2147483648
    %v647 = vor.u32 1.1754944e-38, %v646
    %v648 = vsel %vm645, %v647, %v643
    %v649 = vmul.f32 %v616, %v648
    %v650 = vrcp.pop %v628
    %v651 = vmul.f32 %v628, %v650
    %v652 = vsub.f32 1.0, %v651
    %v653 = vmul.f32 %v650, %v652
    %v654 = vadd.f32 %v650, %v653
    %vm655 = vweird.f32 %v628
    %vm656 = vweird.f32 %v650
    %vm657 = vmor %vm655, %vm656
    %v658 = vsel %vm657, %v650, %v654
    %v659 = vand.u32 2147483647, %v628
    %vm660 = vcmp.eq.f32.partialorder %v659, 8.507059e+37
    %v661 = vand.u32 %v628, 2147483648
    %v662 = vor.u32 1.1754944e-38, %v661
    %v663 = vsel %vm660, %v662, %v658
    %v664 = vmul.f32 %v618, %v663
    %v665 = vrcp.pop %v631
    %v666 = vmul.f32 %v631, %v665
    %v667 = vsub.f32 1.0, %v666
    %v668 = vmul.f32 %v665, %v667
    %v669 = vadd.f32 %v665, %v668
    %vm670 = vweird.f32 %v631
    %vm671 = vweird.f32 %v665
    %vm672 = vmor %vm670, %vm671
    %v673 = vsel %vm672, %v665, %v669
    %v674 = vand.u32 2147483647, %v631
    %vm675 = vcmp.eq.f32.partialorder %v674, 8.507059e+37
    %v676 = vand.u32 %v631, 2147483648
    %v677 = vor.u32 1.1754944e-38, %v676
    %v678 = vsel %vm675, %v677, %v673
    %v679 = vmul.f32 %v620, %v678
    %v680 = vrcp.pop %v634
    %v681 = vmul.f32 %v634, %v680
    %v682 = vsub.f32 1.0, %v681
    %v683 = vmul.f32 %v680, %v682
    %v684 = vadd.f32 %v680, %v683
    %vm685 = vweird.f32 %v634
    %vm686 = vweird.f32 %v680
    %vm687 = vmor %vm685, %vm686
    %v688 = vsel %vm687, %v680, %v684
    %v689 = vand.u32 2147483647, %v634
    %vm690 = vcmp.eq.f32.partialorder %v689, 8.507059e+37
    %v691 = vand.u32 %v634, 2147483648
    %v692 = vor.u32 1.1754944e-38, %v691
    %v693 = vsel %vm690, %v692, %v688
    %v694 = vmul.f32 %v622, %v693
    %v696 = vsel %vm252, %v649, 0
    %v699 = vsel %vm252, %v664, 0
    %701 = vmatpush.msra.mxu0 0.0
    %702 = vmatpush.msra.mxu0 0.0
    %703 = vmatpush.msra.mxu0 0.0
    %704 = vmatpush.msra.mxu0 0.0
    %705 = vmatpush.msra.mxu0 0.0
    %706 = vmatpush.msra.mxu0 0.0
    %707 = vmatpush.msra.mxu0 0.0
    %708 = vmatpush.msra.mxu0 0.0
    %709 = vmatpush.msra.mxu0 0.0
    %710 = vmatpush.msra.mxu0 0.0
    %711 = vmatpush.msra.mxu0 0.0
    %712 = vmatpush.msra.mxu0 0.0
    %713 = vmatpush.msra.mxu0 0.0
    %714 = vmatpush.msra.mxu0 0.0
    %715 = vmatpush.msra.mxu0 %v521
    %716 = vmatpush.msra.mxu0 %v518
    %717 = vmatmul.f32.gmra.mxu0 %v696
    %v718 = vpop.f32.mrf.mxu0
    %v719 = vadd.f32 0.0, %v718
    %720 = vmatmul.f32.gmra.mxu0 %v699
    %v721 = vpop.f32.mrf.mxu0
    %v722 = vadd.f32 0.0, %v721
    %723 = vdwg.mxu0
    %v725 = vsel %vm252, %v679, 0
    %v728 = vsel %vm252, %v694, 0
    %730 = vmatpush.msra.mxu0 0.0
    %731 = vmatpush.msra.mxu0 0.0
    %732 = vmatpush.msra.mxu0 0.0
    %733 = vmatpush.msra.mxu0 0.0
    %734 = vmatpush.msra.mxu0 0.0
    %735 = vmatpush.msra.mxu0 0.0
    %736 = vmatpush.msra.mxu0 0.0
    %737 = vmatpush.msra.mxu0 0.0
    %738 = vmatpush.msra.mxu0 0.0
    %739 = vmatpush.msra.mxu0 0.0
    %740 = vmatpush.msra.mxu0 0.0
    %741 = vmatpush.msra.mxu0 0.0
    %742 = vmatpush.msra.mxu0 0.0
    %743 = vmatpush.msra.mxu0 0.0
    %744 = vmatpush.msra.mxu0 %v527
    %745 = vmatpush.msra.mxu0 %v524
    %746 = vmatmul.f32.gmra.mxu0 %v725
    %v747 = vpop.f32.mrf.mxu0
    %v748 = vadd.f32 0.0, %v747
    %749 = vmatmul.f32.gmra.mxu0 %v728
    %v750 = vpop.f32.mrf.mxu0
    %v751 = vadd.f32 0.0, %v750
    %752 = vdwg.mxu0
    %s753 = scalar_lea.vmem %s7, 8
    %v754 = vld [vmem:[%s753] sm:$0xff]
    %v756 = vsel %vm181, %v719, 0
    %v759 = vsel %vm181, %v722, 0
    %v762 = vsel %vm181, %v748, 0
    %v765 = vsel %vm181, %v751, 0
    %767 = vmatpush.msra.mxu0 0.0
    %768 = vmatpush.msra.mxu0 0.0
    %769 = vmatpush.msra.mxu0 0.0
    %770 = vmatpush.msra.mxu0 0.0
    %771 = vmatpush.msra.mxu0 0.0
    %772 = vmatpush.msra.mxu0 0.0
    %773 = vmatpush.msra.mxu0 0.0
    %774 = vmatpush.msra.mxu0 0.0
    %775 = vmatpush.msra.mxu0 0.0
    %776 = vmatpush.msra.mxu0 0.0
    %777 = vmatpush.msra.mxu0 0.0
    %778 = vmatpush.msra.mxu0 0.0
    %779 = vmatpush.msra.mxu0 0.0
    %780 = vmatpush.msra.mxu0 0.0
    %781 = vmatpush.msra.mxu0 0.0
    %782 = vmatpush.msra.mxu0 %v754
    %783 = vmatmul.f32.gmra.mxu0 %v756
    %v784 = vpop.f32.mrf.mxu0
    %v785 = vadd.f32 0.0, %v784
    %786 = vmatmul.f32.gmra.mxu0 %v759
    %v787 = vpop.f32.mrf.mxu0
    %v788 = vadd.f32 0.0, %v787
    %789 = vmatmul.f32.gmra.mxu0 %v762
    %v790 = vpop.f32.mrf.mxu0
    %v791 = vadd.f32 0.0, %v790
    %792 = vmatmul.f32.gmra.mxu0 %v765
    %v793 = vpop.f32.mrf.mxu0
    %v794 = vadd.f32 0.0, %v793
    %795 = vdwg.mxu0
    %v797 = vsel %vm181, %v373, 0
    %v800 = vsel %vm181, %v376, 0
    %v803 = vsel %vm181, %v402, 0
    %v806 = vsel %vm181, %v405, 0
    %808 = vmatpush.msra.mxu0 0.0
    %809 = vmatpush.msra.mxu0 0.0
    %810 = vmatpush.msra.mxu0 0.0
    %811 = vmatpush.msra.mxu0 0.0
    %812 = vmatpush.msra.mxu0 0.0
    %813 = vmatpush.msra.mxu0 0.0
    %814 = vmatpush.msra.mxu0 0.0
    %815 = vmatpush.msra.mxu0 0.0
    %816 = vmatpush.msra.mxu0 0.0
    %817 = vmatpush.msra.mxu0 0.0
    %818 = vmatpush.msra.mxu0 0.0
    %819 = vmatpush.msra.mxu0 0.0
    %820 = vmatpush.msra.mxu0 0.0
    %821 = vmatpush.msra.mxu0 0.0
    %822 = vmatpush.msra.mxu0 0.0
    %823 = vmatpush.msra.mxu0 %v407
    %824 = vmatmul.f32.gmra.mxu0 %v797
    %v825 = vpop.f32.mrf.mxu0
    %v826 = vadd.f32 %v785, %v825
    %827 = vmatmul.f32.gmra.mxu0 %v800
    %v828 = vpop.f32.mrf.mxu0
    %v829 = vadd.f32 %v788, %v828
    %830 = vmatmul.f32.gmra.mxu0 %v803
    %v831 = vpop.f32.mrf.mxu0
    %v832 = vadd.f32 %v791, %v831
    %833 = vmatmul.f32.gmra.mxu0 %v806
    %v834 = vpop.f32.mrf.mxu0
    %v835 = vadd.f32 %v794, %v834
    %836 = vdwg.mxu0
    %s837 = scalar_lea.vmem %s1, 64
    %v838 = vld [vmem:[%s837] sm:$0xff]
    %v839 = vld [vmem:[%s837 + $0x8] sm:$0xff]
    %v840 = vld [vmem:[%s837 + $0x10] sm:$0xff]
    %v841 = vld [vmem:[%s837 + $0x18] sm:$0xff]
    %s842 = scalar_lea.vmem %s4, 2
    %v843 = vld [vmem:[%s842] sm:$0x1]
    %v845 = vperm.slane %v843, 0
    %847 = vmatpush.msra.mxu0 0.0
    %848 = vmatpush.msra.mxu0 0.0
    %849 = vmatpush.msra.mxu0 0.0
    %850 = vmatpush.msra.mxu0 0.0
    %851 = vmatpush.msra.mxu0 0.0
    %852 = vmatpush.msra.mxu0 0.0
    %853 = vmatpush.msra.mxu0 0.0
    %854 = vmatpush.msra.mxu0 0.0
    %855 = vmatpush.msra.mxu0 0.0
    %856 = vmatpush.msra.mxu0 0.0
    %857 = vmatpush.msra.mxu0 0.0
    %858 = vmatpush.msra.mxu0 0.0
    %859 = vmatpush.msra.mxu0 %v841
    %860 = vmatpush.msra.mxu0 %v840
    %861 = vmatpush.msra.mxu0 %v839
    %862 = vmatpush.msra.mxu0 %v838
    %863 = vmatmul.f32.gmra.mxu0 %v63
    %v864 = vpop.f32.mrf.mxu0
    %v865 = vadd.f32 %v845, %v864
    %866 = vmatmul.f32.gmra.mxu0 %v66
    %v867 = vpop.f32.mrf.mxu0
    %v868 = vadd.f32 %v845, %v867
    %869 = vmatmul.f32.gmra.mxu0 %v69
    %v870 = vpop.f32.mrf.mxu0
    %v871 = vadd.f32 %v845, %v870
    %872 = vmatmul.f32.gmra.mxu0 %v72
    %v873 = vpop.f32.mrf.mxu0
    %v874 = vadd.f32 %v845, %v873
    %875 = vdwg.mxu0
    %v876 = vmul.f32 %v865, 0.35355338
    %v877 = vmul.f32 %v868, 0.35355338
    %v878 = vmul.f32 %v871, 0.35355338
    %v879 = vmul.f32 %v874, 0.35355338
    %s880 = scalar_lea.vmem %s2, 64
    %v881 = vld [vmem:[%s880] sm:$0xff]
    %v882 = vld [vmem:[%s880 + $0x8] sm:$0xff]
    %v883 = vld [vmem:[%s880 + $0x10] sm:$0xff]
    %v884 = vld [vmem:[%s880 + $0x18] sm:$0xff]
    %s885 = scalar_lea.vmem %s5, 2
    %v886 = vld [vmem:[%s885] sm:$0x1]
    %v888 = vperm.slane %v886, 0
    %890 = vmatpush.msra.mxu0 0.0
    %891 = vmatpush.msra.mxu0 0.0
    %892 = vmatpush.msra.mxu0 0.0
    %893 = vmatpush.msra.mxu0 0.0
    %894 = vmatpush.msra.mxu0 0.0
    %895 = vmatpush.msra.mxu0 0.0
    %896 = vmatpush.msra.mxu0 0.0
    %897 = vmatpush.msra.mxu0 0.0
    %898 = vmatpush.msra.mxu0 0.0
    %899 = vmatpush.msra.mxu0 0.0
    %900 = vmatpush.msra.mxu0 0.0
    %901 = vmatpush.msra.mxu0 0.0
    %902 = vmatpush.msra.mxu0 %v884
    %903 = vmatpush.msra.mxu0 %v883
    %904 = vmatpush.msra.mxu0 %v882
    %905 = vmatpush.msra.mxu0 %v881
    %906 = vmatmul.f32.gmra.mxu0 %v63
    %v907 = vpop.f32.mrf.mxu0
    %v908 = vadd.f32 %v888, %v907
    %909 = vmatmul.f32.gmra.mxu0 %v66
    %v910 = vpop.f32.mrf.mxu0
    %v911 = vadd.f32 %v888, %v910
    %912 = vmatmul.f32.gmra.mxu0 %v69
    %v913 = vpop.f32.mrf.mxu0
    %v914 = vadd.f32 %v888, %v913
    %915 = vmatmul.f32.gmra.mxu0 %v72
    %v916 = vpop.f32.mrf.mxu0
    %v917 = vadd.f32 %v888, %v916
    %918 = vdwg.mxu0
    %s919 = scalar_lea.vmem %s3, 64
    %v920 = vld [vmem:[%s919] sm:$0xff]
    %v921 = vld [vmem:[%s919 + $0x8] sm:$0xff]
    %v922 = vld [vmem:[%s919 + $0x10] sm:$0xff]
    %v923 = vld [vmem:[%s919 + $0x18] sm:$0xff]
    %s924 = scalar_lea.vmem %s6, 2
    %v925 = vld [vmem:[%s924] sm:$0x1]
    %v927 = vperm.slane %v925, 0
    %929 = vmatpush.msra.mxu0 0.0
    %930 = vmatpush.msra.mxu0 0.0
    %931 = vmatpush.msra.mxu0 0.0
    %932 = vmatpush.msra.mxu0 0.0
    %933 = vmatpush.msra.mxu0 0.0
    %934 = vmatpush.msra.mxu0 0.0
    %935 = vmatpush.msra.mxu0 0.0
    %936 = vmatpush.msra.mxu0 0.0
    %937 = vmatpush.msra.mxu0 0.0
    %938 = vmatpush.msra.mxu0 0.0
    %939 = vmatpush.msra.mxu0 0.0
    %940 = vmatpush.msra.mxu0 0.0
    %941 = vmatpush.msra.mxu0 %v923
    %942 = vmatpush.msra.mxu0 %v922
    %943 = vmatpush.msra.mxu0 %v921
    %944 = vmatpush.msra.mxu0 %v920
    %945 = vmatmul.f32.gmra.mxu0 %v63
    %v946 = vpop.f32.mrf.mxu0
    %v947 = vadd.f32 %v927, %v946
    %948 = vmatmul.f32.gmra.mxu0 %v66
    %v949 = vpop.f32.mrf.mxu0
    %v950 = vadd.f32 %v927, %v949
    %951 = vmatmul.f32.gmra.mxu0 %v69
    %v952 = vpop.f32.mrf.mxu0
    %v953 = vadd.f32 %v927, %v952
    %954 = vmatmul.f32.gmra.mxu0 %v72
    %v955 = vpop.f32.mrf.mxu0
    %v956 = vadd.f32 %v927, %v955
    %957 = vdwg.mxu0
    %v959 = vsel %vm181, %v876, 0
    %v962 = vsel %vm181, %v877, 0
    %v965 = vsel %vm181, %v908, 0
    %v968 = vsel %vm181, %v911, 0
    %970 = vmatpush.xpose.msra.mxu0 0.0
    %971 = vmatpush.xpose.msra.mxu0 0.0
    %972 = vmatpush.xpose.msra.mxu0 0.0
    %973 = vmatpush.xpose.msra.mxu0 0.0
    %974 = vmatpush.xpose.msra.mxu0 0.0
    %975 = vmatpush.xpose.msra.mxu0 0.0
    %976 = vmatpush.xpose.msra.mxu0 0.0
    %977 = vmatpush.xpose.msra.mxu0 0.0
    %978 = vmatpush.xpose.msra.mxu0 0.0
    %979 = vmatpush.xpose.msra.mxu0 0.0
    %980 = vmatpush.xpose.msra.mxu0 0.0
    %981 = vmatpush.xpose.msra.mxu0 0.0
    %982 = vmatpush.xpose.msra.mxu0 0.0
    %983 = vmatpush.xpose.msra.mxu0 0.0
    %984 = vmatpush.xpose.msra.mxu0 %v968
    %985 = vmatpush.xpose.msra.mxu0 %v965
    %986 = vmatmul.f32.gmra.mxu0 %v959
    %v987 = vpop.f32.mrf.mxu0
    %v988 = vadd.f32 0.0, %v987
    %989 = vmatmul.f32.gmra.mxu0 %v962
    %v990 = vpop.f32.mrf.mxu0
    %v991 = vadd.f32 0.0, %v990
    %992 = vdwg.mxu0
    %v994 = vsel %vm181, %v878, 0
    %v997 = vsel %vm181, %v879, 0
    %v1000 = vsel %vm181, %v914, 0
    %v1003 = vsel %vm181, %v917, 0
    %1005 = vmatpush.xpose.msra.mxu0 0.0
    %1006 = vmatpush.xpose.msra.mxu0 0.0
    %1007 = vmatpush.xpose.msra.mxu0 0.0
    %1008 = vmatpush.xpose.msra.mxu0 0.0
    %1009 = vmatpush.xpose.msra.mxu0 0.0
    %1010 = vmatpush.xpose.msra.mxu0 0.0
    %1011 = vmatpush.xpose.msra.mxu0 0.0
    %1012 = vmatpush.xpose.msra.mxu0 0.0
    %1013 = vmatpush.xpose.msra.mxu0 0.0
    %1014 = vmatpush.xpose.msra.mxu0 0.0
    %1015 = vmatpush.xpose.msra.mxu0 0.0
    %1016 = vmatpush.xpose.msra.mxu0 0.0
    %1017 = vmatpush.xpose.msra.mxu0 0.0
    %1018 = vmatpush.xpose.msra.mxu0 0.0
    %1019 = vmatpush.xpose.msra.mxu0 %v1003
    %1020 = vmatpush.xpose.msra.mxu0 %v1000
    %1021 = vmatmul.f32.gmra.mxu0 %v994
    %v1022 = vpop.f32.mrf.mxu0
    %v1023 = vadd.f32 0.0, %v1022
    %1024 = vmatmul.f32.gmra.mxu0 %v997
    %v1025 = vpop.f32.mrf.mxu0
    %v1026 = vadd.f32 0.0, %v1025
    %1027 = vdwg.mxu0
    %v1028 = vsel %vm252, %v988, -inf
    %1029 = vmax.xlane.f32.xlu0 %v1028
    %v1030 = vpop.xlane.xlu0 %1029
    %v1031 = vsel %vm252, %v991, -inf
    %1032 = vmax.xlane.f32.xlu0 %v1031
    %v1033 = vpop.xlane.xlu0 %1032
    %v1034 = vsel %vm252, %v1023, -inf
    %1035 = vmax.xlane.f32.xlu0 %v1034
    %v1036 = vpop.xlane.xlu0 %1035
    %v1037 = vsel %vm252, %v1026, -inf
    %1038 = vmax.xlane.f32.xlu0 %v1037
    %v1039 = vpop.xlane.xlu0 %1038
    %v1040 = vsub.f32 %v988, %v1030
    %v1041 = vsub.f32 %v991, %v1033
    %v1042 = vsub.f32 %v1023, %v1036
    %v1043 = vsub.f32 %v1026, %v1039
    %v1044 = vmul.f32 %v1040, 1.442695
    %v1045 = vpow.pop %v1044
    %v1046 = vmul.f32 %v1041, 1.442695
    %v1047 = vpow.pop %v1046
    %v1048 = vmul.f32 %v1042, 1.442695
    %v1049 = vpow.pop %v1048
    %v1050 = vmul.f32 %v1043, 1.442695
    %v1051 = vpow.pop %v1050
    %v1052 = vsel %vm252, %v1045, 0.0
    %1053 = vadd.xlane.f32.xlu0 %v1052
    %v1054 = vpop.xlane.xlu0 %1053
    %v1055 = vsel %vm252, %v1047, 0.0
    %1056 = vadd.xlane.f32.xlu0 %v1055
    %v1057 = vpop.xlane.xlu0 %1056
    %v1058 = vsel %vm252, %v1049, 0.0
    %1059 = vadd.xlane.f32.xlu0 %v1058
    %v1060 = vpop.xlane.xlu0 %1059
    %v1061 = vsel %vm252, %v1051, 0.0
    %1062 = vadd.xlane.f32.xlu0 %v1061
    %v1063 = vpop.xlane.xlu0 %1062
    %v1064 = vrcp.pop %v1054
    %v1065 = vmul.f32 %v1054, %v1064
    %v1066 = vsub.f32 1.0, %v1065
    %v1067 = vmul.f32 %v1064, %v1066
    %v1068 = vadd.f32 %v1064, %v1067
    %vm1069 = vweird.f32 %v1054
    %vm1070 = vweird.f32 %v1064
    %vm1071 = vmor %vm1069, %vm1070
    %v1072 = vsel %vm1071, %v1064, %v1068
    %v1073 = vand.u32 2147483647, %v1054
    %vm1074 = vcmp.eq.f32.partialorder %v1073, 8.507059e+37
    %v1075 = vand.u32 %v1054, 2147483648
    %v1076 = vor.u32 1.1754944e-38, %v1075
    %v1077 = vsel %vm1074, %v1076, %v1072
    %v1078 = vmul.f32 %v1045, %v1077
    %v1079 = vrcp.pop %v1057
    %v1080 = vmul.f32 %v1057, %v1079
    %v1081 = vsub.f32 1.0, %v1080
    %v1082 = vmul.f32 %v1079, %v1081
    %v1083 = vadd.f32 %v1079, %v1082
    %vm1084 = vweird.f32 %v1057
    %vm1085 = vweird.f32 %v1079
    %vm1086 = vmor %vm1084, %vm1085
    %v1087 = vsel %vm1086, %v1079, %v1083
    %v1088 = vand.u32 2147483647, %v1057
    %vm1089 = vcmp.eq.f32.partialorder %v1088, 8.507059e+37
    %v1090 = vand.u32 %v1057, 2147483648
    %v1091 = vor.u32 1.1754944e-38, %v1090
    %v1092 = vsel %vm1089, %v1091, %v1087
    %v1093 = vmul.f32 %v1047, %v1092
    %v1094 = vrcp.pop %v1060
    %v1095 = vmul.f32 %v1060, %v1094
    %v1096 = vsub.f32 1.0, %v1095
    %v1097 = vmul.f32 %v1094, %v1096
    %v1098 = vadd.f32 %v1094, %v1097
    %vm1099 = vweird.f32 %v1060
    %vm1100 = vweird.f32 %v1094
    %vm1101 = vmor %vm1099, %vm1100
    %v1102 = vsel %vm1101, %v1094, %v1098
    %v1103 = vand.u32 2147483647, %v1060
    %vm1104 = vcmp.eq.f32.partialorder %v1103, 8.507059e+37
    %v1105 = vand.u32 %v1060, 2147483648
    %v1106 = vor.u32 1.1754944e-38, %v1105
    %v1107 = vsel %vm1104, %v1106, %v1102
    %v1108 = vmul.f32 %v1049, %v1107
    %v1109 = vrcp.pop %v1063
    %v1110 = vmul.f32 %v1063, %v1109
    %v1111 = vsub.f32 1.0, %v1110
    %v1112 = vmul.f32 %v1109, %v1111
    %v1113 = vadd.f32 %v1109, %v1112
    %vm1114 = vweird.f32 %v1063
    %vm1115 = vweird.f32 %v1109
    %vm1116 = vmor %vm1114, %vm1115
    %v1117 = vsel %vm1116, %v1109, %v1113
    %v1118 = vand.u32 2147483647, %v1063
    %vm1119 = vcmp.eq.f32.partialorder %v1118, 8.507059e+37
    %v1120 = vand.u32 %v1063, 2147483648
    %v1121 = vor.u32 1.1754944e-38, %v1120
    %v1122 = vsel %vm1119, %v1121, %v1117
    %v1123 = vmul.f32 %v1051, %v1122
    %v1125 = vsel %vm252, %v1078, 0
    %v1128 = vsel %vm252, %v1093, 0
    %1130 = vmatpush.msra.mxu0 0.0
    %1131 = vmatpush.msra.mxu0 0.0
    %1132 = vmatpush.msra.mxu0 0.0
    %1133 = vmatpush.msra.mxu0 0.0
    %1134 = vmatpush.msra.mxu0 0.0
    %1135 = vmatpush.msra.mxu0 0.0
    %1136 = vmatpush.msra.mxu0 0.0
    %1137 = vmatpush.msra.mxu0 0.0
    %1138 = vmatpush.msra.mxu0 0.0
    %1139 = vmatpush.msra.mxu0 0.0
    %1140 = vmatpush.msra.mxu0 0.0
    %1141 = vmatpush.msra.mxu0 0.0
    %1142 = vmatpush.msra.mxu0 0.0
    %1143 = vmatpush.msra.mxu0 0.0
    %1144 = vmatpush.msra.mxu0 %v950
    %1145 = vmatpush.msra.mxu0 %v947
    %1146 = vmatmul.f32.gmra.mxu0 %v1125
    %v1147 = vpop.f32.mrf.mxu0
    %v1148 = vadd.f32 0.0, %v1147
    %1149 = vmatmul.f32.gmra.mxu0 %v1128
    %v1150 = vpop.f32.mrf.mxu0
    %v1151 = vadd.f32 0.0, %v1150
    %1152 = vdwg.mxu0
    %v1154 = vsel %vm252, %v1108, 0
    %v1157 = vsel %vm252, %v1123, 0
    %1159 = vmatpush.msra.mxu0 0.0
    %1160 = vmatpush.msra.mxu0 0.0
    %1161 = vmatpush.msra.mxu0 0.0
    %1162 = vmatpush.msra.mxu0 0.0
    %1163 = vmatpush.msra.mxu0 0.0
    %1164 = vmatpush.msra.mxu0 0.0
    %1165 = vmatpush.msra.mxu0 0.0
    %1166 = vmatpush.msra.mxu0 0.0
    %1167 = vmatpush.msra.mxu0 0.0
    %1168 = vmatpush.msra.mxu0 0.0
    %1169 = vmatpush.msra.mxu0 0.0
    %1170 = vmatpush.msra.mxu0 0.0
    %1171 = vmatpush.msra.mxu0 0.0
    %1172 = vmatpush.msra.mxu0 0.0
    %1173 = vmatpush.msra.mxu0 %v956
    %1174 = vmatpush.msra.mxu0 %v953
    %1175 = vmatmul.f32.gmra.mxu0 %v1154
    %v1176 = vpop.f32.mrf.mxu0
    %v1177 = vadd.f32 0.0, %v1176
    %1178 = vmatmul.f32.gmra.mxu0 %v1157
    %v1179 = vpop.f32.mrf.mxu0
    %v1180 = vadd.f32 0.0, %v1179
    %1181 = vdwg.mxu0
    %s1182 = scalar_lea.vmem %s7, 16
    %v1183 = vld [vmem:[%s1182] sm:$0xff]
    %v1185 = vsel %vm181, %v1148, 0
    %v1188 = vsel %vm181, %v1151, 0
    %v1191 = vsel %vm181, %v1177, 0
    %v1194 = vsel %vm181, %v1180, 0
    %1196 = vmatpush.msra.mxu0 0.0
    %1197 = vmatpush.msra.mxu0 0.0
    %1198 = vmatpush.msra.mxu0 0.0
    %1199 = vmatpush.msra.mxu0 0.0
    %1200 = vmatpush.msra.mxu0 0.0
    %1201 = vmatpush.msra.mxu0 0.0
    %1202 = vmatpush.msra.mxu0 0.0
    %1203 = vmatpush.msra.mxu0 0.0
    %1204 = vmatpush.msra.mxu0 0.0
    %1205 = vmatpush.msra.mxu0 0.0
    %1206 = vmatpush.msra.mxu0 0.0
    %1207 = vmatpush.msra.mxu0 0.0
    %1208 = vmatpush.msra.mxu0 0.0
    %1209 = vmatpush.msra.mxu0 0.0
    %1210 = vmatpush.msra.mxu0 0.0
    %1211 = vmatpush.msra.mxu0 %v1183
    %1212 = vmatmul.f32.gmra.mxu0 %v1185
    %v1213 = vpop.f32.mrf.mxu0
    %v1214 = vadd.f32 0.0, %v1213
    %1215 = vmatmul.f32.gmra.mxu0 %v1188
    %v1216 = vpop.f32.mrf.mxu0
    %v1217 = vadd.f32 0.0, %v1216
    %1218 = vmatmul.f32.gmra.mxu0 %v1191
    %v1219 = vpop.f32.mrf.mxu0
    %v1220 = vadd.f32 0.0, %v1219
    %1221 = vmatmul.f32.gmra.mxu0 %v1194
    %v1222 = vpop.f32.mrf.mxu0
    %v1223 = vadd.f32 0.0, %v1222
    %1224 = vdwg.mxu0
    %v1225 = vadd.f32 %v826, %v1214
    %v1226 = vadd.f32 %v829, %v1217
    %v1227 = vadd.f32 %v832, %v1220
    %v1228 = vadd.f32 %v835, %v1223
    %s1229 = scalar_lea.vmem %s1, 96
    %v1230 = vld [vmem:[%s1229] sm:$0xff]
    %v1231 = vld [vmem:[%s1229 + $0x8] sm:$0xff]
    %v1232 = vld [vmem:[%s1229 + $0x10] sm:$0xff]
    %v1233 = vld [vmem:[%s1229 + $0x18] sm:$0xff]
    %s1234 = scalar_lea.vmem %s4, 3
    %v1235 = vld [vmem:[%s1234] sm:$0x1]
    %v1237 = vperm.slane %v1235, 0
    %1239 = vmatpush.msra.mxu0 0.0
    %1240 = vmatpush.msra.mxu0 0.0
    %1241 = vmatpush.msra.mxu0 0.0
    %1242 = vmatpush.msra.mxu0 0.0
    %1243 = vmatpush.msra.mxu0 0.0
    %1244 = vmatpush.msra.mxu0 0.0
    %1245 = vmatpush.msra.mxu0 0.0
    %1246 = vmatpush.msra.mxu0 0.0
    %1247 = vmatpush.msra.mxu0 0.0
    %1248 = vmatpush.msra.mxu0 0.0
    %1249 = vmatpush.msra.mxu0 0.0
    %1250 = vmatpush.msra.mxu0 0.0
    %1251 = vmatpush.msra.mxu0 %v1233
    %1252 = vmatpush.msra.mxu0 %v1232
    %1253 = vmatpush.msra.mxu0 %v1231
    %1254 = vmatpush.msra.mxu0 %v1230
    %1255 = vmatmul.f32.gmra.mxu0 %v63
    %v1256 = vpop.f32.mrf.mxu0
    %v1257 = vadd.f32 %v1237, %v1256
    %1258 = vmatmul.f32.gmra.mxu0 %v66
    %v1259 = vpop.f32.mrf.mxu0
    %v1260 = vadd.f32 %v1237, %v1259
    %1261 = vmatmul.f32.gmra.mxu0 %v69
    %v1262 = vpop.f32.mrf.mxu0
    %v1263 = vadd.f32 %v1237, %v1262
    %1264 = vmatmul.f32.gmra.mxu0 %v72
    %v1265 = vpop.f32.mrf.mxu0
    %v1266 = vadd.f32 %v1237, %v1265
    %1267 = vdwg.mxu0
    %v1268 = vmul.f32 %v1257, 0.35355338
    %v1269 = vmul.f32 %v1260, 0.35355338
    %v1270 = vmul.f32 %v1263, 0.35355338
    %v1271 = vmul.f32 %v1266, 0.35355338
    %s1272 = scalar_lea.vmem %s2, 96
    %v1273 = vld [vmem:[%s1272] sm:$0xff]
    %v1274 = vld [vmem:[%s1272 + $0x8] sm:$0xff]
    %v1275 = vld [vmem:[%s1272 + $0x10] sm:$0xff]
    %v1276 = vld [vmem:[%s1272 + $0x18] sm:$0xff]
    %s1277 = scalar_lea.vmem %s5, 3
    %v1278 = vld [vmem:[%s1277] sm:$0x1]
    %v1280 = vperm.slane %v1278, 0
    %1282 = vmatpush.msra.mxu0 0.0
    %1283 = vmatpush.msra.mxu0 0.0
    %1284 = vmatpush.msra.mxu0 0.0
    %1285 = vmatpush.msra.mxu0 0.0
    %1286 = vmatpush.msra.mxu0 0.0
    %1287 = vmatpush.msra.mxu0 0.0
    %1288 = vmatpush.msra.mxu0 0.0
    %1289 = vmatpush.msra.mxu0 0.0
    %1290 = vmatpush.msra.mxu0 0.0
    %1291 = vmatpush.msra.mxu0 0.0
    %1292 = vmatpush.msra.mxu0 0.0
    %1293 = vmatpush.msra.mxu0 0.0
    %1294 = vmatpush.msra.mxu0 %v1276
    %1295 = vmatpush.msra.mxu0 %v1275
    %1296 = vmatpush.msra.mxu0 %v1274
    %1297 = vmatpush.msra.mxu0 %v1273
    %1298 = vmatmul.f32.gmra.mxu0 %v63
    %v1299 = vpop.f32.mrf.mxu0
    %v1300 = vadd.f32 %v1280, %v1299
    %1301 = vmatmul.f32.gmra.mxu0 %v66
    %v1302 = vpop.f32.mrf.mxu0
    %v1303 = vadd.f32 %v1280, %v1302
    %1304 = vmatmul.f32.gmra.mxu0 %v69
    %v1305 = vpop.f32.mrf.mxu0
    %v1306 = vadd.f32 %v1280, %v1305
    %1307 = vmatmul.f32.gmra.mxu0 %v72
    %v1308 = vpop.f32.mrf.mxu0
    %v1309 = vadd.f32 %v1280, %v1308
    %1310 = vdwg.mxu0
    %s1311 = scalar_lea.vmem %s3, 96
    %v1312 = vld [vmem:[%s1311] sm:$0xff]
    %v1313 = vld [vmem:[%s1311 + $0x8] sm:$0xff]
    %v1314 = vld [vmem:[%s1311 + $0x10] sm:$0xff]
    %v1315 = vld [vmem:[%s1311 + $0x18] sm:$0xff]
    %s1316 = scalar_lea.vmem %s6, 3
    %v1317 = vld [vmem:[%s1316] sm:$0x1]
    %v1319 = vperm.slane %v1317, 0
    %1321 = vmatpush.msra.mxu0 0.0
    %1322 = vmatpush.msra.mxu0 0.0
    %1323 = vmatpush.msra.mxu0 0.0
    %1324 = vmatpush.msra.mxu0 0.0
    %1325 = vmatpush.msra.mxu0 0.0
    %1326 = vmatpush.msra.mxu0 0.0
    %1327 = vmatpush.msra.mxu0 0.0
    %1328 = vmatpush.msra.mxu0 0.0
    %1329 = vmatpush.msra.mxu0 0.0
    %1330 = vmatpush.msra.mxu0 0.0
    %1331 = vmatpush.msra.mxu0 0.0
    %1332 = vmatpush.msra.mxu0 0.0
    %1333 = vmatpush.msra.mxu0 %v1315
    %1334 = vmatpush.msra.mxu0 %v1314
    %1335 = vmatpush.msra.mxu0 %v1313
    %1336 = vmatpush.msra.mxu0 %v1312
    %1337 = vmatmul.f32.gmra.mxu0 %v63
    %v1338 = vpop.f32.mrf.mxu0
    %v1339 = vadd.f32 %v1319, %v1338
    %1340 = vmatmul.f32.gmra.mxu0 %v66
    %v1341 = vpop.f32.mrf.mxu0
    %v1342 = vadd.f32 %v1319, %v1341
    %1343 = vmatmul.f32.gmra.mxu0 %v69
    %v1344 = vpop.f32.mrf.mxu0
    %v1345 = vadd.f32 %v1319, %v1344
    %1346 = vmatmul.f32.gmra.mxu0 %v72
    %v1347 = vpop.f32.mrf.mxu0
    %v1348 = vadd.f32 %v1319, %v1347
    %1349 = vdwg.mxu0
    %v1351 = vsel %vm181, %v1268, 0
    %v1354 = vsel %vm181, %v1269, 0
    %v1357 = vsel %vm181, %v1300, 0
    %v1360 = vsel %vm181, %v1303, 0
    %1362 = vmatpush.xpose.msra.mxu0 0.0
    %1363 = vmatpush.xpose.msra.mxu0 0.0
    %1364 = vmatpush.xpose.msra.mxu0 0.0
    %1365 = vmatpush.xpose.msra.mxu0 0.0
    %1366 = vmatpush.xpose.msra.mxu0 0.0
    %1367 = vmatpush.xpose.msra.mxu0 0.0
    %1368 = vmatpush.xpose.msra.mxu0 0.0
    %1369 = vmatpush.xpose.msra.mxu0 0.0
    %1370 = vmatpush.xpose.msra.mxu0 0.0
    %1371 = vmatpush.xpose.msra.mxu0 0.0
    %1372 = vmatpush.xpose.msra.mxu0 0.0
    %1373 = vmatpush.xpose.msra.mxu0 0.0
    %1374 = vmatpush.xpose.msra.mxu0 0.0
    %1375 = vmatpush.xpose.msra.mxu0 0.0
    %1376 = vmatpush.xpose.msra.mxu0 %v1360
    %1377 = vmatpush.xpose.msra.mxu0 %v1357
    %1378 = vmatmul.f32.gmra.mxu0 %v1351
    %v1379 = vpop.f32.mrf.mxu0
    %v1380 = vadd.f32 0.0, %v1379
    %1381 = vmatmul.f32.gmra.mxu0 %v1354
    %v1382 = vpop.f32.mrf.mxu0
    %v1383 = vadd.f32 0.0, %v1382
    %1384 = vdwg.mxu0
    %v1386 = vsel %vm181, %v1270, 0
    %v1389 = vsel %vm181, %v1271, 0
    %v1392 = vsel %vm181, %v1306, 0
    %v1395 = vsel %vm181, %v1309, 0
    %1397 = vmatpush.xpose.msra.mxu0 0.0
    %1398 = vmatpush.xpose.msra.mxu0 0.0
    %1399 = vmatpush.xpose.msra.mxu0 0.0
    %1400 = vmatpush.xpose.msra.mxu0 0.0
    %1401 = vmatpush.xpose.msra.mxu0 0.0
    %1402 = vmatpush.xpose.msra.mxu0 0.0
    %1403 = vmatpush.xpose.msra.mxu0 0.0
    %1404 = vmatpush.xpose.msra.mxu0 0.0
    %1405 = vmatpush.xpose.msra.mxu0 0.0
    %1406 = vmatpush.xpose.msra.mxu0 0.0
    %1407 = vmatpush.xpose.msra.mxu0 0.0
    %1408 = vmatpush.xpose.msra.mxu0 0.0
    %1409 = vmatpush.xpose.msra.mxu0 0.0
    %1410 = vmatpush.xpose.msra.mxu0 0.0
    %1411 = vmatpush.xpose.msra.mxu0 %v1395
    %1412 = vmatpush.xpose.msra.mxu0 %v1392
    %1413 = vmatmul.f32.gmra.mxu0 %v1386
    %v1414 = vpop.f32.mrf.mxu0
    %v1415 = vadd.f32 0.0, %v1414
    %1416 = vmatmul.f32.gmra.mxu0 %v1389
    %v1417 = vpop.f32.mrf.mxu0
    %v1418 = vadd.f32 0.0, %v1417
    %1419 = vdwg.mxu0
    %v1420 = vsel %vm252, %v1380, -inf
    %1421 = vmax.xlane.f32.xlu0 %v1420
    %v1422 = vpop.xlane.xlu0 %1421
    %v1423 = vsel %vm252, %v1383, -inf
    %1424 = vmax.xlane.f32.xlu0 %v1423
    %v1425 = vpop.xlane.xlu0 %1424
    %v1426 = vsel %vm252, %v1415, -inf
    %1427 = vmax.xlane.f32.xlu0 %v1426
    %v1428 = vpop.xlane.xlu0 %1427
    %v1429 = vsel %vm252, %v1418, -inf
    %1430 = vmax.xlane.f32.xlu0 %v1429
    %v1431 = vpop.xlane.xlu0 %1430
    %v1432 = vsub.f32 %v1380, %v1422
    %v1433 = vsub.f32 %v1383, %v1425
    %v1434 = vsub.f32 %v1415, %v1428
    %v1435 = vsub.f32 %v1418, %v1431
    %v1436 = vmul.f32 %v1432, 1.442695
    %v1437 = vpow.pop %v1436
    %v1438 = vmul.f32 %v1433, 1.442695
    %v1439 = vpow.pop %v1438
    %v1440 = vmul.f32 %v1434, 1.442695
    %v1441 = vpow.pop %v1440
    %v1442 = vmul.f32 %v1435, 1.442695
    %v1443 = vpow.pop %v1442
    %v1444 = vsel %vm252, %v1437, 0.0
    %1445 = vadd.xlane.f32.xlu0 %v1444
    %v1446 = vpop.xlane.xlu0 %1445
    %v1447 = vsel %vm252, %v1439, 0.0
    %1448 = vadd.xlane.f32.xlu0 %v1447
    %v1449 = vpop.xlane.xlu0 %1448
    %v1450 = vsel %vm252, %v1441, 0.0
    %1451 = vadd.xlane.f32.xlu0 %v1450
    %v1452 = vpop.xlane.xlu0 %1451
    %v1453 = vsel %vm252, %v1443, 0.0
    %1454 = vadd.xlane.f32.xlu0 %v1453
    %v1455 = vpop.xlane.xlu0 %1454
    %v1456 = vrcp.pop %v1446
    %v1457 = vmul.f32 %v1446, %v1456
    %v1458 = vsub.f32 1.0, %v1457
    %v1459 = vmul.f32 %v1456, %v1458
    %v1460 = vadd.f32 %v1456, %v1459
    %vm1461 = vweird.f32 %v1446
    %vm1462 = vweird.f32 %v1456
    %vm1463 = vmor %vm1461, %vm1462
    %v1464 = vsel %vm1463, %v1456, %v1460
    %v1465 = vand.u32 2147483647, %v1446
    %vm1466 = vcmp.eq.f32.partialorder %v1465, 8.507059e+37
    %v1467 = vand.u32 %v1446, 2147483648
    %v1468 = vor.u32 1.1754944e-38, %v1467
    %v1469 = vsel %vm1466, %v1468, %v1464
    %v1470 = vmul.f32 %v1437, %v1469
    %v1471 = vrcp.pop %v1449
    %v1472 = vmul.f32 %v1449, %v1471
    %v1473 = vsub.f32 1.0, %v1472
    %v1474 = vmul.f32 %v1471, %v1473
    %v1475 = vadd.f32 %v1471, %v1474
    %vm1476 = vweird.f32 %v1449
    %vm1477 = vweird.f32 %v1471
    %vm1478 = vmor %vm1476, %vm1477
    %v1479 = vsel %vm1478, %v1471, %v1475
    %v1480 = vand.u32 2147483647, %v1449
    %vm1481 = vcmp.eq.f32.partialorder %v1480, 8.507059e+37
    %v1482 = vand.u32 %v1449, 2147483648
    %v1483 = vor.u32 1.1754944e-38, %v1482
    %v1484 = vsel %vm1481, %v1483, %v1479
    %v1485 = vmul.f32 %v1439, %v1484
    %v1486 = vrcp.pop %v1452
    %v1487 = vmul.f32 %v1452, %v1486
    %v1488 = vsub.f32 1.0, %v1487
    %v1489 = vmul.f32 %v1486, %v1488
    %v1490 = vadd.f32 %v1486, %v1489
    %vm1491 = vweird.f32 %v1452
    %vm1492 = vweird.f32 %v1486
    %vm1493 = vmor %vm1491, %vm1492
    %v1494 = vsel %vm1493, %v1486, %v1490
    %v1495 = vand.u32 2147483647, %v1452
    %vm1496 = vcmp.eq.f32.partialorder %v1495, 8.507059e+37
    %v1497 = vand.u32 %v1452, 2147483648
    %v1498 = vor.u32 1.1754944e-38, %v1497
    %v1499 = vsel %vm1496, %v1498, %v1494
    %v1500 = vmul.f32 %v1441, %v1499
    %v1501 = vrcp.pop %v1455
    %v1502 = vmul.f32 %v1455, %v1501
    %v1503 = vsub.f32 1.0, %v1502
    %v1504 = vmul.f32 %v1501, %v1503
    %v1505 = vadd.f32 %v1501, %v1504
    %vm1506 = vweird.f32 %v1455
    %vm1507 = vweird.f32 %v1501
    %vm1508 = vmor %vm1506, %vm1507
    %v1509 = vsel %vm1508, %v1501, %v1505
    %v1510 = vand.u32 2147483647, %v1455
    %vm1511 = vcmp.eq.f32.partialorder %v1510, 8.507059e+37
    %v1512 = vand.u32 %v1455, 2147483648
    %v1513 = vor.u32 1.1754944e-38, %v1512
    %v1514 = vsel %vm1511, %v1513, %v1509
    %v1515 = vmul.f32 %v1443, %v1514
    %v1517 = vsel %vm252, %v1470, 0
    %v1520 = vsel %vm252, %v1485, 0
    %1522 = vmatpush.msra.mxu0 0.0
    %1523 = vmatpush.msra.mxu0 0.0
    %1524 = vmatpush.msra.mxu0 0.0
    %1525 = vmatpush.msra.mxu0 0.0
    %1526 = vmatpush.msra.mxu0 0.0
    %1527 = vmatpush.msra.mxu0 0.0
    %1528 = vmatpush.msra.mxu0 0.0
    %1529 = vmatpush.msra.mxu0 0.0
    %1530 = vmatpush.msra.mxu0 0.0
    %1531 = vmatpush.msra.mxu0 0.0
    %1532 = vmatpush.msra.mxu0 0.0
    %1533 = vmatpush.msra.mxu0 0.0
    %1534 = vmatpush.msra.mxu0 0.0
    %1535 = vmatpush.msra.mxu0 0.0
    %1536 = vmatpush.msra.mxu0 %v1342
    %1537 = vmatpush.msra.mxu0 %v1339
    %1538 = vmatmul.f32.gmra.mxu0 %v1517
    %v1539 = vpop.f32.mrf.mxu0
    %v1540 = vadd.f32 0.0, %v1539
    %1541 = vmatmul.f32.gmra.mxu0 %v1520
    %v1542 = vpop.f32.mrf.mxu0
    %v1543 = vadd.f32 0.0, %v1542
    %1544 = vdwg.mxu0
    %v1546 = vsel %vm252, %v1500, 0
    %v1549 = vsel %vm252, %v1515, 0
    %1551 = vmatpush.msra.mxu0 0.0
    %1552 = vmatpush.msra.mxu0 0.0
    %1553 = vmatpush.msra.mxu0 0.0
    %1554 = vmatpush.msra.mxu0 0.0
    %1555 = vmatpush.msra.mxu0 0.0
    %1556 = vmatpush.msra.mxu0 0.0
    %1557 = vmatpush.msra.mxu0 0.0
    %1558 = vmatpush.msra.mxu0 0.0
    %1559 = vmatpush.msra.mxu0 0.0
    %1560 = vmatpush.msra.mxu0 0.0
    %1561 = vmatpush.msra.mxu0 0.0
    %1562 = vmatpush.msra.mxu0 0.0
    %1563 = vmatpush.msra.mxu0 0.0
    %1564 = vmatpush.msra.mxu0 0.0
    %1565 = vmatpush.msra.mxu0 %v1348
    %1566 = vmatpush.msra.mxu0 %v1345
    %1567 = vmatmul.f32.gmra.mxu0 %v1546
    %v1568 = vpop.f32.mrf.mxu0
    %v1569 = vadd.f32 0.0, %v1568
    %1570 = vmatmul.f32.gmra.mxu0 %v1549
    %v1571 = vpop.f32.mrf.mxu0
    %v1572 = vadd.f32 0.0, %v1571
    %1573 = vdwg.mxu0
    %s1574 = scalar_lea.vmem %s7, 24
    %v1575 = vld [vmem:[%s1574] sm:$0xff]
    %v1577 = vsel %vm181, %v1540, 0
    %v1580 = vsel %vm181, %v1543, 0
    %v1583 = vsel %vm181, %v1569, 0
    %v1586 = vsel %vm181, %v1572, 0
    %1588 = vmatpush.msra.mxu0 0.0
    %1589 = vmatpush.msra.mxu0 0.0
    %1590 = vmatpush.msra.mxu0 0.0
    %1591 = vmatpush.msra.mxu0 0.0
    %1592 = vmatpush.msra.mxu0 0.0
    %1593 = vmatpush.msra.mxu0 0.0
    %1594 = vmatpush.msra.mxu0 0.0
    %1595 = vmatpush.msra.mxu0 0.0
    %1596 = vmatpush.msra.mxu0 0.0
    %1597 = vmatpush.msra.mxu0 0.0
    %1598 = vmatpush.msra.mxu0 0.0
    %1599 = vmatpush.msra.mxu0 0.0
    %1600 = vmatpush.msra.mxu0 0.0
    %1601 = vmatpush.msra.mxu0 0.0
    %1602 = vmatpush.msra.mxu0 0.0
    %1603 = vmatpush.msra.mxu0 %v1575
    %1604 = vmatmul.f32.gmra.mxu0 %v1577
    %v1605 = vpop.f32.mrf.mxu0
    %v1606 = vadd.f32 0.0, %v1605
    %1607 = vmatmul.f32.gmra.mxu0 %v1580
    %v1608 = vpop.f32.mrf.mxu0
    %v1609 = vadd.f32 0.0, %v1608
    %1610 = vmatmul.f32.gmra.mxu0 %v1583
    %v1611 = vpop.f32.mrf.mxu0
    %v1612 = vadd.f32 0.0, %v1611
    %1613 = vmatmul.f32.gmra.mxu0 %v1586
    %v1614 = vpop.f32.mrf.mxu0
    %v1615 = vadd.f32 0.0, %v1614
    %1616 = vdwg.mxu0
    %v1617 = vadd.f32 %v1225, %v1606
    %v1618 = vadd.f32 %v1226, %v1609
    %v1619 = vadd.f32 %v1227, %v1612
    %v1620 = vadd.f32 %v1228, %v1615
    %v1621 = vld [vmem:[%s8] sm:$0x1]
    %v1623 = vperm.slane %v1621, 0
    %v1625 = vadd.f32 %v1617, %v1623
    %v1626 = vadd.f32 %v1618, %v1623
    %v1627 = vadd.f32 %v1619, %v1623
    %v1628 = vadd.f32 %v1620, %v1623
    %v1629 = vld [vmem:[%s9] sm:$0x1]
    %v1631 = vperm.slane %v1629, 0
    %v1633 = vmul.f32 %v1625, %v1631
    %v1634 = vmul.f32 %v1626, %v1631
    %v1635 = vmul.f32 %v1627, %v1631
    %v1636 = vmul.f32 %v1628, %v1631
    %v1637 = vsel %vm61, %v1633, 0.0
    %1638 = vadd.xlane.f32.xlu0 %v1637
    %v1639 = vpop.xlane.xlu0 %1638
    %v1640 = vsel %vm61, %v1634, 0.0
    %1641 = vadd.xlane.f32.xlu0 %v1640
    %v1642 = vpop.xlane.xlu0 %1641
    %v1643 = vsel %vm61, %v1635, 0.0
    %1644 = vadd.xlane.f32.xlu0 %v1643
    %v1645 = vpop.xlane.xlu0 %1644
    %v1646 = vsel %vm61, %v1636, 0.0
    %1647 = vadd.xlane.f32.xlu0 %v1646
    %v1648 = vpop.xlane.xlu0 %1647
    %s1649 = sld [smem:[#allocation2]]
    %v1650 = vstv %s1649
    %v1651 = vadd.f32 %v1639, %v1650
    %v1652 = vadd.f32 %v1642, %v1650
    %v1653 = vadd.f32 %v1645, %v1650
    %v1654 = vadd.f32 %v1648, %v1650
    %v1655 = vxor.u32 %v1651, 2147483648
    %v1656 = vxor.u32 %v1652, 2147483648
    %v1657 = vxor.u32 %v1653, 2147483648
    %v1658 = vxor.u32 %v1654, 2147483648
    %v1659 = vmul.f32 %v1655, 1.442695
    %v1660 = vpow.pop %v1659
    %v1661 = vmul.f32 %v1656, 1.442695
    %v1662 = vpow.pop %v1661
    %v1663 = vmul.f32 %v1657, 1.442695
    %v1664 = vpow.pop %v1663
    %v1665 = vmul.f32 %v1658, 1.442695
    %v1666 = vpow.pop %v1665
    %v1667 = vadd.f32 %v1660, 1.0
    %v1668 = vadd.f32 %v1662, 1.0
    %v1669 = vadd.f32 %v1664, 1.0
    %v1670 = vadd.f32 %v1666, 1.0
    %v1671 = vrcp.pop %v1667
    %v1672 = vmul.f32 %v1667, %v1671
    %v1673 = vsub.f32 1.0, %v1672
    %v1674 = vmul.f32 %v1671, %v1673
    %v1675 = vadd.f32 %v1671, %v1674
    %vm1676 = vweird.f32 %v1667
    %vm1677 = vweird.f32 %v1671
    %vm1678 = vmor %vm1676, %vm1677
    %v1679 = vsel %vm1678, %v1671, %v1675
    %v1680 = vand.u32 2147483647, %v1667
    %vm1681 = vcmp.eq.f32.partialorder %v1680, 8.507059e+37
    %v1682 = vand.u32 %v1667, 2147483648
    %v1683 = vor.u32 1.1754944e-38, %v1682
    %v1684 = vsel %vm1681, %v1683, %v1679
    %v1685 = vmul.f32 1.0, %v1684
    %v1686 = vrcp.pop %v1668
    %v1687 = vmul.f32 %v1668, %v1686
    %v1688 = vsub.f32 1.0, %v1687
    %v1689 = vmul.f32 %v1686, %v1688
    %v1690 = vadd.f32 %v1686, %v1689
    %vm1691 = vweird.f32 %v1668
    %vm1692 = vweird.f32 %v1686
    %vm1693 = vmor %vm1691, %vm1692
    %v1694 = vsel %vm1693, %v1686, %v1690
    %v1695 = vand.u32 2147483647, %v1668
    %vm1696 = vcmp.eq.f32.partialorder %v1695, 8.507059e+37
    %v1697 = vand.u32 %v1668, 2147483648
    %v1698 = vor.u32 1.1754944e-38, %v1697
    %v1699 = vsel %vm1696, %v1698, %v1694
    %v1700 = vmul.f32 1.0, %v1699
    %v1701 = vrcp.pop %v1669
    %v1702 = vmul.f32 %v1669, %v1701
    %v1703 = vsub.f32 1.0, %v1702
    %v1704 = vmul.f32 %v1701, %v1703
    %v1705 = vadd.f32 %v1701, %v1704
    %vm1706 = vweird.f32 %v1669
    %vm1707 = vweird.f32 %v1701
    %vm1708 = vmor %vm1706, %vm1707
    %v1709 = vsel %vm1708, %v1701, %v1705
    %v1710 = vand.u32 2147483647, %v1669
    %vm1711 = vcmp.eq.f32.partialorder %v1710, 8.507059e+37
    %v1712 = vand.u32 %v1669, 2147483648
    %v1713 = vor.u32 1.1754944e-38, %v1712
    %v1714 = vsel %vm1711, %v1713, %v1709
    %v1715 = vmul.f32 1.0, %v1714
    %v1716 = vrcp.pop %v1670
    %v1717 = vmul.f32 %v1670, %v1716
    %v1718 = vsub.f32 1.0, %v1717
    %v1719 = vmul.f32 %v1716, %v1718
    %v1720 = vadd.f32 %v1716, %v1719
    %vm1721 = vweird.f32 %v1670
    %vm1722 = vweird.f32 %v1716
    %vm1723 = vmor %vm1721, %vm1722
    %v1724 = vsel %vm1723, %v1716, %v1720
    %v1725 = vand.u32 2147483647, %v1670
    %vm1726 = vcmp.eq.f32.partialorder %v1725, 8.507059e+37
    %v1727 = vand.u32 %v1670, 2147483648
    %v1728 = vor.u32 1.1754944e-38, %v1727
    %v1729 = vsel %vm1726, %v1728, %v1724
    %v1730 = vmul.f32 1.0, %v1729
    %v1735 = vlaneseq
    %v1736 = vand.u32 %v1735, 127
    %v1737 = vperm.slane %v1685, %v1736
    %v1738 = vadd.s32 %v1736, 4294967288
    %v1739 = vperm.slane %v1700, %v1738
    %vm1740 = vcmask 130112
    %v1741 = vsel %vm1740, %v1739, %v1737
    %v1742 = vperm.slane %v1715, %v1736
    %v1743 = vperm.slane %v1730, %v1738
    %v1744 = vsel %vm1740, %v1743, %v1742
    %vm1745 = vcmask 1041409
    %v1746 = vsel %vm1745, %v1744, %v1741
    %vm1748 = vcmask 123904
    %1749 = vst.msk [vmem:[#allocation5] sm:$0x3] %vm1748, %v1746
    %v1750 = vsel %vm1748, %v1746, -inf
    %1751 = vmax.xlane.f32.xlu0 %v1750
    %v1752 = vpop.xlane.xlu0 %1751
    %v1754 = vperm.slane %v1752, 0
    %v1755 = vperm.slane %v1752, 1
    %vm1758 = vcmp.ge.f32.partialorder %v1685, %v1754
    %vm1759 = vcmp.ge.f32.partialorder %v1700, %v1754
    %vm1760 = vcmp.ge.f32.partialorder %v1715, %v1755
    %vm1761 = vcmp.ge.f32.partialorder %v1730, %v1755
    %v1762 = vlaneseq
    %v1763 = vshrl.u32 %v1762, 7
    %1765 = vset.pattern.permute.xlu0 %v1763
    %1766 = vperm.xlu0 %1765, %v1736
    %v1767 = vpop.permute.xlu0 %1766
    %v1768 = vlaneseq
    %v1769 = vshrl.u32 %v1768, 7
    %v1770 = vadd.s32 %v1769, 8
    %1771 = vset.pattern.permute.xlu0 %v1770
    %1772 = vperm.xlu0 %1771, %v1736
    %v1773 = vpop.permute.xlu0 %1772
    %v1774 = vsel %vm1758, %v1767, 16
    %v1775 = vsel %vm1759, %v1773, 16
    %v1776 = vsel %vm1760, %v1767, 16
    %v1777 = vsel %vm1761, %v1773, 16
    %1778 = vset.pattern.permute.xlu0 0
    %1779 = vperm.xlu0 %1778, %v1774
    %v1780 = vpop.permute.xlu0 %1779
    %1781 = vset.pattern.permute.xlu0 0
    %1782 = vperm.xlu0 %1781, %v1775
    %v1783 = vpop.permute.xlu0 %1782
    %1784 = vset.pattern.permute.xlu0 0
    %1785 = vperm.xlu0 %1784, %v1776
    %v1786 = vpop.permute.xlu0 %1785
    %1787 = vset.pattern.permute.xlu0 0
    %1788 = vperm.xlu0 %1787, %v1777
    %v1789 = vpop.permute.xlu0 %1788
    %v1790 = vperm.slane %v1780, %v1736
    %v1791 = vperm.slane %v1783, %v1738
    %v1792 = vsel %vm1740, %v1791, %v1790
    %v1793 = vperm.slane %v1786, %v1736
    %v1794 = vperm.slane %v1789, %v1738
    %v1795 = vsel %vm1740, %v1794, %v1793
    %v1796 = vsel %vm1745, %v1795, %v1792
    %v1797 = vsel %vm1748, %v1796, 2147483647
    %v1798 = vand.u32 %v1797, 65535
    %v1799 = vshra.s32 %v1797, 16
    %v1800 = vcvt.s32.f32 %v1798
    %v1801 = vcvt.s32.f32 %v1799
    %1802 = vmin.xlane.f32.xlu0 %v1801
    %v1803 = vpop.xlane.xlu0 %1802
    %vm1804 = vcmp.eq.f32.partialorder %v1801, %v1803
    %v1805 = vsel %vm1804, %v1800, inf
    %1806 = vmin.xlane.f32.xlu0 %v1805
    %v1807 = vpop.xlane.xlu0 %1806
    %v1808 = vcvt.f32.s32 %v1807
    %v1809 = vcvt.f32.s32 %v1803
    %v1810 = vshll.u32 %v1809, 16
    %v1811 = vadd.s32 %v1810, %v1808
    %vm1812 = vcmp.eq.s32.totalorder %v1736, %v1811
    %v1813 = vsel %vm1812, 1, 0
    %v1814 = vcvt.s32.f32 %v1813
    %v1815 = vadd.f32 %v1814, 0.0
    %vm1816 = vcmp.gt.f32.partialorder %v1814, 0.0
    %v1817 = vsel %vm1816, -1e+30, %v1746
    %v1818 = vsel %vm1748, %v1817, -inf
    %1819 = vmax.xlane.f32.xlu0 %v1818
    %v1820 = vpop.xlane.xlu0 %1819
    %vm1821 = vcmp.ge.f32.partialorder %v1817, %v1820
    %v1822 = vsel %vm1821, %v1736, 16
    %v1823 = vsel %vm1748, %v1822, 2147483647
    %v1824 = vand.u32 %v1823, 65535
    %v1825 = vshra.s32 %v1823, 16
    %v1826 = vcvt.s32.f32 %v1824
    %v1827 = vcvt.s32.f32 %v1825
    %1828 = vmin.xlane.f32.xlu0 %v1827
    %v1829 = vpop.xlane.xlu0 %1828
    %vm1830 = vcmp.eq.f32.partialorder %v1827, %v1829
    %v1831 = vsel %vm1830, %v1826, inf
    %1832 = vmin.xlane.f32.xlu0 %v1831
    %v1833 = vpop.xlane.xlu0 %1832
    %v1834 = vcvt.f32.s32 %v1833
    %v1835 = vcvt.f32.s32 %v1829
    %v1836 = vshll.u32 %v1835, 16
    %v1837 = vadd.s32 %v1836, %v1834
    %vm1838 = vcmp.eq.s32.totalorder %v1736, %v1837
    %v1839 = vsel %vm1838, 1, 0
    %v1840 = vcvt.s32.f32 %v1839
    %v1841 = vadd.f32 %v1815, %v1840
    %vm1842 = vcmp.gt.f32.partialorder %v1840, 0.0
    %v1843 = vsel %vm1842, -1e+30, %v1817
    %v1844 = vsel %vm1748, %v1843, -inf
    %1845 = vmax.xlane.f32.xlu0 %v1844
    %v1846 = vpop.xlane.xlu0 %1845
    %vm1847 = vcmp.ge.f32.partialorder %v1843, %v1846
    %v1848 = vsel %vm1847, %v1736, 16
    %v1849 = vsel %vm1748, %v1848, 2147483647
    %v1850 = vand.u32 %v1849, 65535
    %v1851 = vshra.s32 %v1849, 16
    %v1852 = vcvt.s32.f32 %v1850
    %v1853 = vcvt.s32.f32 %v1851
    %1854 = vmin.xlane.f32.xlu0 %v1853
    %v1855 = vpop.xlane.xlu0 %1854
    %vm1856 = vcmp.eq.f32.partialorder %v1853, %v1855
    %v1857 = vsel %vm1856, %v1852, inf
    %1858 = vmin.xlane.f32.xlu0 %v1857
    %v1859 = vpop.xlane.xlu0 %1858
    %v1860 = vcvt.f32.s32 %v1859
    %v1861 = vcvt.f32.s32 %v1855
    %v1862 = vshll.u32 %v1861, 16
    %v1863 = vadd.s32 %v1862, %v1860
    %vm1864 = vcmp.eq.s32.totalorder %v1736, %v1863
    %v1865 = vsel %vm1864, 1, 0
    %v1866 = vcvt.s32.f32 %v1865
    %v1867 = vadd.f32 %v1841, %v1866
    %vm1868 = vcmp.gt.f32.partialorder %v1866, 0.0
    %v1869 = vsel %vm1868, -1e+30, %v1843
    %v1870 = vsel %vm1748, %v1869, -inf
    %1871 = vmax.xlane.f32.xlu0 %v1870
    %v1872 = vpop.xlane.xlu0 %1871
    %vm1873 = vcmp.ge.f32.partialorder %v1869, %v1872
    %v1874 = vsel %vm1873, %v1736, 16
    %v1875 = vsel %vm1748, %v1874, 2147483647
    %v1876 = vand.u32 %v1875, 65535
    %v1877 = vshra.s32 %v1875, 16
    %v1878 = vcvt.s32.f32 %v1876
    %v1879 = vcvt.s32.f32 %v1877
    %1880 = vmin.xlane.f32.xlu0 %v1879
    %v1881 = vpop.xlane.xlu0 %1880
    %vm1882 = vcmp.eq.f32.partialorder %v1879, %v1881
    %v1883 = vsel %vm1882, %v1878, inf
    %1884 = vmin.xlane.f32.xlu0 %v1883
    %v1885 = vpop.xlane.xlu0 %1884
    %v1886 = vcvt.f32.s32 %v1885
    %v1887 = vcvt.f32.s32 %v1881
    %v1888 = vshll.u32 %v1887, 16
    %v1889 = vadd.s32 %v1888, %v1886
    %vm1890 = vcmp.eq.s32.totalorder %v1736, %v1889
    %v1891 = vsel %vm1890, 1, 0
    %v1892 = vcvt.s32.f32 %v1891
    %v1893 = vadd.f32 %v1867, %v1892
    %v1894 = vmul.f32 %v1893, 0.25
    %v1895 = vlaneseq
    %v1896 = vshrl.u32 %v1895, 7
    %v1897 = vmul.u32 %v1896, 16
    %vm1898 = vcmp.ge.s32.totalorder %v1736, %v1897
    %v1899 = vadd.s32 %v1897, 16
    %vm1900 = vcmp.lt.s32.totalorder %v1736, %v1899
    %vm1901 = vmand %vm1898, %vm1900
    %1903 = vrot.lane.b32.xlu0 %v1894, 16
    %v1904 = vpop.permute.xlu0 %1903
    %v1906 = vsel %vm252, %v1894, %v1904
    %v1907 = vsel %vm1901, %v1906, 0.0
    %v1909 = vsel %vm61, %v1907, 0
    %1911 = vmatpush.msra.mxu0 0.0
    %1912 = vmatpush.msra.mxu0 0.0
    %1913 = vmatpush.msra.mxu0 0.0
    %1914 = vmatpush.msra.mxu0 0.0
    %1915 = vmatpush.msra.mxu0 0.0
    %1916 = vmatpush.msra.mxu0 0.0
    %1917 = vmatpush.msra.mxu0 0.0
    %1918 = vmatpush.msra.mxu0 0.0
    %1919 = vmatpush.msra.mxu0 0.0
    %1920 = vmatpush.msra.mxu0 0.0
    %1921 = vmatpush.msra.mxu0 0.0
    %1922 = vmatpush.msra.mxu0 0.0
    %1923 = vmatpush.msra.mxu0 %v52
    %1924 = vmatpush.msra.mxu0 %v51
    %1925 = vmatpush.msra.mxu0 %v50
    %1926 = vmatpush.msra.mxu0 %v49
    %1927 = vmatmul.f32.gmra.mxu0 %v1909
    %v1928 = vpop.f32.mrf.mxu0
    %v1929 = vadd.f32 0.0, %v1928
    %1930 = vdwg.mxu0
    %v1931 = vld [vmem:[%s11] sm:$0xff]
    %v1932 = vld [vmem:[%s11 + $0x8] sm:$0xff]
    %v1933 = vld [vmem:[%s11 + $0x10] sm:$0xff]
    %v1934 = vld [vmem:[%s11 + $0x18] sm:$0xff]
    %v1935 = vld [vmem:[%s12] sm:$0x1]
    %v1937 = vperm.slane %v1935, 0
    %v1940 = vsel %vm61, %v1929, 0
    %1942 = vmatpush.msra.mxu0 0.0
    %1943 = vmatpush.msra.mxu0 0.0
    %1944 = vmatpush.msra.mxu0 0.0
    %1945 = vmatpush.msra.mxu0 0.0
    %1946 = vmatpush.msra.mxu0 0.0
    %1947 = vmatpush.msra.mxu0 0.0
    %1948 = vmatpush.msra.mxu0 0.0
    %1949 = vmatpush.msra.mxu0 0.0
    %1950 = vmatpush.msra.mxu0 0.0
    %1951 = vmatpush.msra.mxu0 0.0
    %1952 = vmatpush.msra.mxu0 0.0
    %1953 = vmatpush.msra.mxu0 0.0
    %1954 = vmatpush.msra.mxu0 %v1934
    %1955 = vmatpush.msra.mxu0 %v1933
    %1956 = vmatpush.msra.mxu0 %v1932
    %1957 = vmatpush.msra.mxu0 %v1931
    %1958 = vmatmul.f32.gmra.mxu0 %v1940
    %v1959 = vpop.f32.mrf.mxu0
    %v1960 = vadd.f32 %v1937, %v1959
    %1961 = vdwg.mxu0
    %1962 = vst.msk [vmem:[#allocation3] sm:$0x3] %vm1748, %v1960
    // Predicated region
    $region54: #{tpu_custom_call.1} parent=1 // pred_check
      _
    $region55: #{tpu_custom_call.1} parent=1 // pred_check_branch
      %1964 = sbr.rel (0) target = $region57
    $region56: #{tpu_custom_call.1} parent=1 // pred_region
      %1966 = vsyncadd [#allocation4], 0
      %s1968 = sshll.u32 [#allocation3], 4
      %s1969 = int_to_ptr.vmem [resolvable:$true] %s1968
      %s1970 = sshll.u32 %s13, 4
      %s1971 = int_to_ptr.hbm [resolvable:$true] %s1970
      %1973 = dma.vmem_to_hbm [thread:$0]  %s1969, 32, %s1971, [#allocation4]
    $region57: #{tpu_custom_call.1} parent=1 // pred_fallthru
      _
    // Predicated region
    $region58: #{tpu_custom_call.1} parent=1 // pred_check
      _
    $region59: #{tpu_custom_call.1} parent=1 // pred_check_branch
      %1975 = sbr.rel (0) target = $region61
    $region60: #{tpu_custom_call.1} parent=1 // pred_region
      %1977 = vsyncadd [#allocation6], 0
      %s1979 = sshll.u32 [#allocation5], 4
      %s1980 = int_to_ptr.vmem [resolvable:$true] %s1979
      %s1981 = sshll.u32 %s14, 4
      %s1982 = int_to_ptr.hbm [resolvable:$true] %s1981
      %1984 = dma.vmem_to_hbm [thread:$0]  %s1980, 32, %s1982, [#allocation6]
    $region61: #{tpu_custom_call.1} parent=1 // pred_fallthru
      _
    // Predicated region
    $region62: #{tpu_custom_call.1} parent=1 // pred_check
      _
    $region63: #{tpu_custom_call.1} parent=1 // pred_check_branch
      %1986 = sbr.rel (0) target = $region65
    $region64: #{tpu_custom_call.1} parent=1 // pred_region
      %1988 = dma.done [#allocation4], 32
    $region65: #{tpu_custom_call.1} parent=1 // pred_fallthru
      _
    // Predicated region
    $region66: #{tpu_custom_call.1} parent=1 // pred_check
      _
    $region67: #{tpu_custom_call.1} parent=1 // pred_check_branch
      %1990 = sbr.rel (0) target = $region69
    $region68: #{tpu_custom_call.1} parent=1 // pred_region
      %1992 = dma.done [#allocation6], 32
    $region69: #{tpu_custom_call.1} parent=1 // pred_fallthru
      _
    %1993 = vsyncpa [#allocation4], 1
    %1994 = vsyncpa [#allocation6], 1

</llo_original>
